<compile_context>
chip_gen: v5e
topology: v5e:2x2
jax: 0.10.0
libtpu: 0.0.40
codegen_flags: <defaults>
</compile_context>

<pallas_src>
import functools

import jax
import jax.numpy as jnp
from jax import lax
from jax.experimental import pallas as pl
from jax.experimental.pallas import tpu as pltpu

# ---------------- model hyper-parameters (small, consistent with module) ----
NINPUT = 32
NHIDDEN = 32
NLAYERS = 2
NVOCAB = 50
BATCH = 2
SEQ = 8

BPAD = 8            # batch padded to one full sublane group
VEMB = 64           # embedding-table rows padded 50 -> 64 (sublane aligned)
VPAD = 128          # lane-dense padded vocab for the logit store
G = 3 * NHIDDEN     # fused gate width (r|z|n) = 96 lanes


def _vspec():
    return pl.BlockSpec(memory_space=pltpu.MemorySpace.VMEM)


def _sig(x):
    # single-EUP sigmoid: sigmoid(x) == 0.5 * (tanh(0.5 x) + 1)
    return 0.5 * (jnp.tanh(0.5 * x) + 1.0)


# ---------------------------------------------------------------------------
# Fused kernel: embedding (one-hot matmul) -> wavefronted 2-layer GRU ->
# per-step output Linear (vocab padded to 128 lanes, time-major rows).
# ---------------------------------------------------------------------------
def lstmlm_fused_kernel(tok_ref, emb_ref, w0_ref, w1_ref, bias_ref, wout_ref,
                        h0_ref, logit_ref, hn_ref):
    H, BP, T = NHIDDEN, BPAD, SEQ
    TB = T * BP

    # --- embedding lookup as an exact one-hot matmul (time-major, batch-padded)
    tok = tok_ref[...]                                            # (TB, 1) int32
    onehot = (lax.broadcasted_iota(jnp.int32, (TB, VEMB), 1)
              == tok).astype(jnp.float32)                         # (TB, VEMB)
    x0 = jnp.dot(onehot, emb_ref[...],
                 preferred_element_type=jnp.float32)              # (TB, NINPUT)
    # TODO(synk): dropout is identity here (eval-mode forward); training-mode
    # RNG dropout masks are not implemented.

    # --- unpack fused weights / biases, hoist all loads & broadcasts ----------
    w0 = w0_ref[...]                      # (NINPUT + H, 3H)
    wih0 = w0[0:NINPUT, :]
    whh0 = w0[NINPUT:NINPUT + H, :]
    w1 = w1_ref[...]                      # (2H, 3H)
    wih1 = w1[0:H, :]
    whh1 = w1[H:2 * H, :]
    wout = wout_ref[...]                  # (H, VPAD)

    bias = bias_ref[...]                  # (8, VPAD) packed bias rows
    bi0 = bias[0:1, 0:G]                  # b_ih0 + [b_hr0, b_hz0, 0]
    bh0_b = jnp.broadcast_to(bias[1:2, 0:G], (BP, G))    # [0, 0, b_hn0]
    bi1_b = jnp.broadcast_to(bias[2:3, 0:G], (BP, G))    # b_ih1 + [b_hr1, b_hz1, 0]
    bh1_b = jnp.broadcast_to(bias[3:4, 0:G], (BP, G))    # [0, 0, b_hn1]
    bout_b = jnp.broadcast_to(bias[4:5, :], (BP, VPAD))  # output bias (padded)

    # --- layer-0 input projection hoisted off the serial path (one big matmul)
    gi0 = jnp.dot(x0, wih0, preferred_element_type=jnp.float32) + bi0   # (TB, 3H)

    h0 = h0_ref[0]                        # (BP, H)
    h1 = h0_ref[1]

    # --- wavefronted recurrence (fully unrolled): layer-1 step t can overlap
    #     layer-0 step t+1; all activations stay in vregs ----------------------
    for t in range(T):
        lo = t * BP

        # layer 0, step t
        g0 = gi0[lo:lo + BP, :]                                   # aligned (8, 3H)
        gh0 = jnp.dot(h0, whh0, preferred_element_type=jnp.float32) + bh0_b
        r0 = _sig(g0[:, 0:H] + gh0[:, 0:H])
        z0 = _sig(g0[:, H:2 * H] + gh0[:, H:2 * H])
        n0 = jnp.tanh(g0[:, 2 * H:G] + r0 * gh0[:, 2 * H:G])
        h0 = (1.0 - z0) * n0 + z0 * h0

        # layer 1, step t (input = fresh layer-0 output, straight from vregs)
        gi1 = jnp.dot(h0, wih1, preferred_element_type=jnp.float32) + bi1_b
        gh1 = jnp.dot(h1, whh1, preferred_element_type=jnp.float32) + bh1_b
        r1 = _sig(gi1[:, 0:H] + gh1[:, 0:H])
        z1 = _sig(gi1[:, H:2 * H] + gh1[:, H:2 * H])
        n1 = jnp.tanh(gi1[:, 2 * H:G] + r1 * gh1[:, 2 * H:G])
        h1 = (1.0 - z1) * n1 + z1 * h1

        # output projection, time-major rows: aligned (8, 128) full-vreg store
        logit_ref[pl.ds(lo, BP), :] = (
            jnp.dot(h1, wout, preferred_element_type=jnp.float32) + bout_b
        ).astype(logit_ref.dtype)

    hn_ref[0] = h0
    hn_ref[1] = h1


_fused_call = pl.pallas_call(
    lstmlm_fused_kernel,
    out_shape=(jax.ShapeDtypeStruct((SEQ * BPAD, VPAD), jnp.float32),
               jax.ShapeDtypeStruct((NLAYERS, BPAD, NHIDDEN), jnp.float32)),
    in_specs=[_vspec() for _ in range(7)],
    out_specs=(_vspec(), _vspec()),
    input_output_aliases={6: 1},          # hidden-state in -> hidden-state out
)


# ---------------------------------------------------------------------------
# Forward wrapper
# ---------------------------------------------------------------------------
def lstmlm_forward(kparams, tokens, hidden):
    """tokens: (B, T) int32, hidden: (nlayers, B, H). Returns (logit, hidden)."""
    B, T = tokens.shape
    assert B <= BPAD and T == SEQ
    # time-major tokens, batch padded to BPAD (pad tokens = 0, discarded later)
    tok_tm = jnp.zeros((T, BPAD), jnp.int32).at[:, :B].set(tokens.T.astype(jnp.int32))
    h_pad = jnp.zeros((NLAYERS, BPAD, NHIDDEN), jnp.float32).at[:, :B, :].set(hidden)

    logit_pad, hn_pad = _fused_call(
        tok_tm.reshape(T * BPAD, 1),
        kparams["emb"], kparams["w0"], kparams["w1"],
        kparams["bias"], kparams["w_out"], h_pad)

    # time-major padded (T*BPAD, VPAD) -> batch-first flat (B*T, NVOCAB)
    logit = logit_pad.reshape(T, BPAD, VPAD)[:, :B, :NVOCAB]
    logit = jnp.swapaxes(logit, 0, 1).reshape(B * T, NVOCAB)
    return logit, hn_pad[:, :B, :]


# ---------------------------------------------------------------------------
# Weight prep (done ONCE, outside the forward path): transpose, fuse gates,
# stack [w_ih ; w_hh], fold r/z biases, pack all biases into one (8,128) array,
# pad embedding rows and vocab lanes.
# ---------------------------------------------------------------------------
def prepare_kernel_params(params):
    H = NHIDDEN
    kp = {}
    kp["emb"] = jnp.zeros((VEMB, NINPUT), jnp.float32).at[:NVOCAB, :].set(
        params["embedding"])

    bias_rows = []
    for l in range(NLAYERS):
        w_ih = params[f"w_ih_{l}"]        # (3H, D_in), PyTorch layout (r, z, n)
        w_hh = params[f"w_hh_{l}"]        # (3H, H)
        b_ih = params[f"b_ih_{l}"]        # (3H,)
        b_hh = params[f"b_hh_{l}"]        # (3H,)
        # stacked [w_ih.T ; w_hh.T] -> (D_in + H, 3H), sublane-aligned split
        kp[f"w{l}"] = jnp.concatenate([w_ih.T, w_hh.T], axis=0)
        # input-proj bias: b_ih + (b_hh for r,z only)
        bi = b_ih + jnp.concatenate([b_hh[0:2 * H], jnp.zeros((H,), jnp.float32)])
        # hidden-proj bias: b_hn in the n slot only (stays inside r*(.))
        bh = jnp.concatenate([jnp.zeros((2 * H,), jnp.float32), b_hh[2 * H:3 * H]])
        bias_rows.append(jnp.pad(bi, (0, VPAD - G)))
        bias_rows.append(jnp.pad(bh, (0, VPAD - G)))
    bias_rows.append(jnp.pad(params["b_out"], (0, VPAD - NVOCAB)))
    while len(bias_rows) < 8:
        bias_rows.append(jnp.zeros((VPAD,), jnp.float32))
    kp["bias"] = jnp.stack(bias_rows, axis=0)                       # (8, VPAD)

    # output Linear, vocab padded 50 -> 128 for lane-dense stores
    kp["w_out"] = jnp.pad(params["w_out"], ((0, 0), (0, VPAD - NVOCAB)))
    return kp


# ---------------------------------------------------------------------------
# Pure-JAX reference (for correctness check)
# ---------------------------------------------------------------------------
def gru_ref(x_bt, h0, w_ih, w_hh, b_ih, b_hh):
    B, T, _ = x_bt.shape
    H = h0.shape[1]
    h = h0
    ys = []
    for t in range(T):
        x_t = x_bt[:, t, :]
        gi = x_t @ w_ih.T + b_ih
        gh = h @ w_hh.T + b_hh
        r = jax.nn.sigmoid(gi[:, 0:H] + gh[:, 0:H])
        z = jax.nn.sigmoid(gi[:, H:2 * H] + gh[:, H:2 * H])
        n = jnp.tanh(gi[:, 2 * H:3 * H] + r * gh[:, 2 * H:3 * H])
        h = (1.0 - z) * n + z * h
        ys.append(h)
    return jnp.stack(ys, axis=1), h


def lstmlm_ref(params, tokens, hidden):
    x = params["embedding"][tokens]
    new_hidden = []
    for l in range(NLAYERS):
        x, h_l = gru_ref(x, hidden[l],
                         params[f"w_ih_{l}"], params[f"w_hh_{l}"],
                         params[f"b_ih_{l}"], params[f"b_hh_{l}"])
        new_hidden.append(h_l)
    B, T, H = x.shape
    logit = x.reshape(B * T, H) @ params["w_out"] + params["b_out"]
    return logit, jnp.stack(new_hidden, axis=0)


# ---------------------------------------------------------------------------
# Deterministic parameter init (mirrors LSTMLM.init_weights + GRU defaults)
# ---------------------------------------------------------------------------
def init_params(key):
    keys = jax.random.split(key, 3 + 4 * NLAYERS)
    initrange = 0.1
    params = {}
    params["embedding"] = jax.random.uniform(
        keys[0], (NVOCAB, NINPUT), jnp.float32, -initrange, initrange)
    # linear_out: weight uniform(-0.1, 0.1), bias zero. Stored as (H, V) = W.T
    params["w_out"] = jax.random.uniform(
        keys[1], (NHIDDEN, NVOCAB), jnp.float32, -initrange, initrange)
    params["b_out"] = jnp.zeros((NVOCAB,), jnp.float32)
    # GRU: PyTorch default init uniform(-1/sqrt(H), 1/sqrt(H))
    stdv = 1.0 / (NHIDDEN ** 0.5)
    for l in range(NLAYERS):
        d_in = NINPUT if l == 0 else NHIDDEN
        k = keys[3 + 4 * l: 3 + 4 * (l + 1)]
        params[f"w_ih_{l}"] = jax.random.uniform(
            k[0], (3 * NHIDDEN, d_in), jnp.float32, -stdv, stdv)
        params[f"w_hh_{l}"] = jax.random.uniform(
            k[1], (3 * NHIDDEN, NHIDDEN), jnp.float32, -stdv, stdv)
        params[f"b_ih_{l}"] = jax.random.uniform(
            k[2], (3 * NHIDDEN,), jnp.float32, -stdv, stdv)
        params[f"b_hh_{l}"] = jax.random.uniform(
            k[3], (3 * NHIDDEN,), jnp.float32, -stdv, stdv)
    return params


if __name__ == "__main__":
    key = jax.random.PRNGKey(0)
    pkey, tkey = jax.random.split(key)
    params = init_params(pkey)
    kparams = prepare_kernel_params(params)   # one-time weight layout prep

    tokens = jax.random.randint(tkey, (BATCH, SEQ), 0, NVOCAB, dtype=jnp.int32)
    hidden0 = jnp.zeros((NLAYERS, BATCH, NHIDDEN), jnp.float32)  # init_hidden

    fwd = jax.jit(functools.partial(lstmlm_forward, kparams))
    logit, hidden = fwd(tokens, hidden0)
    jax.block_until_ready((logit, hidden))

    assert logit.shape == (BATCH * SEQ, NVOCAB)
    assert hidden.shape == (NLAYERS, BATCH, NHIDDEN)

    # correctness vs pure-JAX reference
    logit_ref, hidden_ref = lstmlm_ref(params, tokens, hidden0)
    assert jnp.allclose(logit, logit_ref, rtol=1e-2, atol=1e-2), "logit mismatch"
    assert jnp.allclose(hidden, hidden_ref, rtol=1e-2, atol=1e-2), "hidden mismatch"

    print("KERNEL_OK")
</pallas_src>

<mosaic_0001>
module attributes {stable_mosaic.version = 11 : i64} {
  func.func @lstmlm_fused_kernel(%arg0: memref<64x1xi32, #tpu.memory_space<vmem>>, %arg1: memref<64x32xf32, #tpu.memory_space<vmem>>, %arg2: memref<64x96xf32, #tpu.memory_space<vmem>>, %arg3: memref<64x96xf32, #tpu.memory_space<vmem>>, %arg4: memref<8x128xf32, #tpu.memory_space<vmem>>, %arg5: memref<32x128xf32, #tpu.memory_space<vmem>>, %arg6: memref<2x8x32xf32, #tpu.memory_space<vmem>>, %arg7: memref<64x128xf32, #tpu.memory_space<vmem>>, %arg8: memref<2x8x32xf32, #tpu.memory_space<vmem>>) attributes {dimension_semantics = [], scalar_prefetch = 0 : i64, scratch_operands = 0 : i64, tpu.core_type = #tpu.core_type<tc>} {
    %c0 = arith.constant 0 : index
    %c0_0 = arith.constant 0 : index
    %0 = vector.load %arg0[%c0, %c0_0] : memref<64x1xi32, #tpu.memory_space<vmem>>, vector<64x1xi32>
    %1 = tpu.iota {dimensions = array<i32: 1>} : vector<64x64xi32>
    %2 = vector.broadcast %0 : vector<64x1xi32> to vector<64x64xi32>
    %3 = arith.cmpi eq, %1, %2 : vector<64x64xi32>
    %4 = arith.extui %3 : vector<64x64xi1> to vector<64x64xi32>
    %5 = arith.sitofp %4 : vector<64x64xi32> to vector<64x64xf32>
    %c0_1 = arith.constant 0 : index
    %c0_2 = arith.constant 0 : index
    %6 = vector.load %arg1[%c0_1, %c0_2] : memref<64x32xf32, #tpu.memory_space<vmem>>, vector<64x32xf32>
    %cst = arith.constant dense<0.000000e+00> : vector<64x32xf32>
    %7 = tpu.matmul %5, %6, %cst {dimension_numbers = #tpu.dot_dimension_numbers<[1], [0], [0], [1], [0, 0, 1, 1], [], []>} : vector<64x64xf32>, vector<64x32xf32>, vector<64x32xf32> -> vector<64x32xf32>
    %c0_3 = arith.constant 0 : index
    %c0_4 = arith.constant 0 : index
    %8 = vector.load %arg2[%c0_3, %c0_4] : memref<64x96xf32, #tpu.memory_space<vmem>>, vector<64x96xf32>
    %9 = vector.extract_strided_slice %8 {offsets = [0, 0], sizes = [32, 96], strides = [1, 1]} : vector<64x96xf32> to vector<32x96xf32>
    %10 = vector.extract_strided_slice %8 {offsets = [32, 0], sizes = [32, 96], strides = [1, 1]} : vector<64x96xf32> to vector<32x96xf32>
    %c0_5 = arith.constant 0 : index
    %c0_6 = arith.constant 0 : index
    %11 = vector.load %arg3[%c0_5, %c0_6] : memref<64x96xf32, #tpu.memory_space<vmem>>, vector<64x96xf32>
    %12 = vector.extract_strided_slice %11 {offsets = [0, 0], sizes = [32, 96], strides = [1, 1]} : vector<64x96xf32> to vector<32x96xf32>
    %13 = vector.extract_strided_slice %11 {offsets = [32, 0], sizes = [32, 96], strides = [1, 1]} : vector<64x96xf32> to vector<32x96xf32>
    %c0_7 = arith.constant 0 : index
    %c0_8 = arith.constant 0 : index
    %14 = vector.load %arg5[%c0_7, %c0_8] : memref<32x128xf32, #tpu.memory_space<vmem>>, vector<32x128xf32>
    %c0_9 = arith.constant 0 : index
    %c0_10 = arith.constant 0 : index
    %15 = vector.load %arg4[%c0_9, %c0_10] : memref<8x128xf32, #tpu.memory_space<vmem>>, vector<8x128xf32>
    %16 = vector.extract_strided_slice %15 {offsets = [0, 0], sizes = [1, 96], strides = [1, 1]} : vector<8x128xf32> to vector<1x96xf32>
    %17 = vector.extract_strided_slice %15 {offsets = [1, 0], sizes = [1, 96], strides = [1, 1]} : vector<8x128xf32> to vector<1x96xf32>
    %18 = vector.shape_cast %17 : vector<1x96xf32> to vector<1x96xf32>
    %19 = vector.broadcast %18 : vector<1x96xf32> to vector<8x96xf32>
    %20 = vector.extract_strided_slice %15 {offsets = [2, 0], sizes = [1, 96], strides = [1, 1]} : vector<8x128xf32> to vector<1x96xf32>
    %21 = vector.shape_cast %20 : vector<1x96xf32> to vector<1x96xf32>
    %22 = vector.broadcast %21 : vector<1x96xf32> to vector<8x96xf32>
    %23 = vector.extract_strided_slice %15 {offsets = [3, 0], sizes = [1, 96], strides = [1, 1]} : vector<8x128xf32> to vector<1x96xf32>
    %24 = vector.shape_cast %23 : vector<1x96xf32> to vector<1x96xf32>
    %25 = vector.broadcast %24 : vector<1x96xf32> to vector<8x96xf32>
    %26 = vector.extract_strided_slice %15 {offsets = [4, 0], sizes = [1, 128], strides = [1, 1]} : vector<8x128xf32> to vector<1x128xf32>
    %27 = vector.shape_cast %26 : vector<1x128xf32> to vector<1x128xf32>
    %28 = vector.broadcast %27 : vector<1x128xf32> to vector<8x128xf32>
    %cst_11 = arith.constant dense<0.000000e+00> : vector<64x96xf32>
    %29 = tpu.matmul %7, %9, %cst_11 {dimension_numbers = #tpu.dot_dimension_numbers<[1], [0], [0], [1], [0, 0, 1, 1], [], []>} : vector<64x32xf32>, vector<32x96xf32>, vector<64x96xf32> -> vector<64x96xf32>
    %30 = vector.broadcast %16 : vector<1x96xf32> to vector<64x96xf32>
    %31 = arith.addf %29, %30 : vector<64x96xf32>
    %c0_12 = arith.constant 0 : index
    %c0_13 = arith.constant 0 : index
    %c0_14 = arith.constant 0 : index
    %32 = vector.load %arg6[%c0_12, %c0_13, %c0_14] : memref<2x8x32xf32, #tpu.memory_space<vmem>>, vector<1x8x32xf32>
    %33 = vector.shape_cast %32 : vector<1x8x32xf32> to vector<8x32xf32>
    %c1 = arith.constant 1 : index
    %c0_15 = arith.constant 0 : index
    %c0_16 = arith.constant 0 : index
    %34 = vector.load %arg6[%c1, %c0_15, %c0_16] : memref<2x8x32xf32, #tpu.memory_space<vmem>>, vector<1x8x32xf32>
    %35 = vector.shape_cast %34 : vector<1x8x32xf32> to vector<8x32xf32>
    %36 = vector.extract_strided_slice %31 {offsets = [0, 0], sizes = [8, 96], strides = [1, 1]} : vector<64x96xf32> to vector<8x96xf32>
    %cst_17 = arith.constant dense<0.000000e+00> : vector<8x96xf32>
    %37 = tpu.matmul %33, %10, %cst_17 {dimension_numbers = #tpu.dot_dimension_numbers<[1], [0], [0], [1], [0, 0, 1, 1], [], []>} : vector<8x32xf32>, vector<32x96xf32>, vector<8x96xf32> -> vector<8x96xf32>
    %38 = arith.addf %37, %19 : vector<8x96xf32>
    %39 = vector.extract_strided_slice %36 {offsets = [0, 0], sizes = [8, 32], strides = [1, 1]} : vector<8x96xf32> to vector<8x32xf32>
    %40 = vector.extract_strided_slice %38 {offsets = [0, 0], sizes = [8, 32], strides = [1, 1]} : vector<8x96xf32> to vector<8x32xf32>
    %41 = arith.addf %39, %40 : vector<8x32xf32>
    %cst_18 = arith.constant 5.000000e-01 : f32
    %42 = vector.broadcast %cst_18 : f32 to vector<8x32xf32>
    %43 = arith.mulf %42, %41 : vector<8x32xf32>
    %44 = math.tanh %43 : vector<8x32xf32>
    %cst_19 = arith.constant 1.000000e+00 : f32
    %45 = vector.broadcast %cst_19 : f32 to vector<8x32xf32>
    %46 = arith.addf %44, %45 : vector<8x32xf32>
    %cst_20 = arith.constant 5.000000e-01 : f32
    %47 = vector.broadcast %cst_20 : f32 to vector<8x32xf32>
    %48 = arith.mulf %47, %46 : vector<8x32xf32>
    %49 = vector.extract_strided_slice %36 {offsets = [0, 32], sizes = [8, 32], strides = [1, 1]} : vector<8x96xf32> to vector<8x32xf32>
    %50 = vector.extract_strided_slice %38 {offsets = [0, 32], sizes = [8, 32], strides = [1, 1]} : vector<8x96xf32> to vector<8x32xf32>
    %51 = arith.addf %49, %50 : vector<8x32xf32>
    %cst_21 = arith.constant 5.000000e-01 : f32
    %52 = vector.broadcast %cst_21 : f32 to vector<8x32xf32>
    %53 = arith.mulf %52, %51 : vector<8x32xf32>
    %54 = math.tanh %53 : vector<8x32xf32>
    %cst_22 = arith.constant 1.000000e+00 : f32
    %55 = vector.broadcast %cst_22 : f32 to vector<8x32xf32>
    %56 = arith.addf %54, %55 : vector<8x32xf32>
    %cst_23 = arith.constant 5.000000e-01 : f32
    %57 = vector.broadcast %cst_23 : f32 to vector<8x32xf32>
    %58 = arith.mulf %57, %56 : vector<8x32xf32>
    %59 = vector.extract_strided_slice %36 {offsets = [0, 64], sizes = [8, 32], strides = [1, 1]} : vector<8x96xf32> to vector<8x32xf32>
    %60 = vector.extract_strided_slice %38 {offsets = [0, 64], sizes = [8, 32], strides = [1, 1]} : vector<8x96xf32> to vector<8x32xf32>
    %61 = arith.mulf %48, %60 : vector<8x32xf32>
    %62 = arith.addf %59, %61 : vector<8x32xf32>
    %63 = math.tanh %62 : vector<8x32xf32>
    %cst_24 = arith.constant 1.000000e+00 : f32
    %64 = vector.broadcast %cst_24 : f32 to vector<8x32xf32>
    %65 = arith.subf %64, %58 : vector<8x32xf32>
    %66 = arith.mulf %65, %63 : vector<8x32xf32>
    %67 = arith.mulf %58, %33 : vector<8x32xf32>
    %68 = arith.addf %66, %67 : vector<8x32xf32>
    %cst_25 = arith.constant dense<0.000000e+00> : vector<8x96xf32>
    %69 = tpu.matmul %68, %12, %cst_25 {dimension_numbers = #tpu.dot_dimension_numbers<[1], [0], [0], [1], [0, 0, 1, 1], [], []>} : vector<8x32xf32>, vector<32x96xf32>, vector<8x96xf32> -> vector<8x96xf32>
    %70 = arith.addf %69, %22 : vector<8x96xf32>
    %cst_26 = arith.constant dense<0.000000e+00> : vector<8x96xf32>
    %71 = tpu.matmul %35, %13, %cst_26 {dimension_numbers = #tpu.dot_dimension_numbers<[1], [0], [0], [1], [0, 0, 1, 1], [], []>} : vector<8x32xf32>, vector<32x96xf32>, vector<8x96xf32> -> vector<8x96xf32>
    %72 = arith.addf %71, %25 : vector<8x96xf32>
    %73 = vector.extract_strided_slice %70 {offsets = [0, 0], sizes = [8, 32], strides = [1, 1]} : vector<8x96xf32> to vector<8x32xf32>
    %74 = vector.extract_strided_slice %72 {offsets = [0, 0], sizes = [8, 32], strides = [1, 1]} : vector<8x96xf32> to vector<8x32xf32>
    %75 = arith.addf %73, %74 : vector<8x32xf32>
    %cst_27 = arith.constant 5.000000e-01 : f32
    %76 = vector.broadcast %cst_27 : f32 to vector<8x32xf32>
    %77 = arith.mulf %76, %75 : vector<8x32xf32>
    %78 = math.tanh %77 : vector<8x32xf32>
    %cst_28 = arith.constant 1.000000e+00 : f32
    %79 = vector.broadcast %cst_28 : f32 to vector<8x32xf32>
    %80 = arith.addf %78, %79 : vector<8x32xf32>
    %cst_29 = arith.constant 5.000000e-01 : f32
    %81 = vector.broadcast %cst_29 : f32 to vector<8x32xf32>
    %82 = arith.mulf %81, %80 : vector<8x32xf32>
    %83 = vector.extract_strided_slice %70 {offsets = [0, 32], sizes = [8, 32], strides = [1, 1]} : vector<8x96xf32> to vector<8x32xf32>
    %84 = vector.extract_strided_slice %72 {offsets = [0, 32], sizes = [8, 32], strides = [1, 1]} : vector<8x96xf32> to vector<8x32xf32>
    %85 = arith.addf %83, %84 : vector<8x32xf32>
    %cst_30 = arith.constant 5.000000e-01 : f32
    %86 = vector.broadcast %cst_30 : f32 to vector<8x32xf32>
    %87 = arith.mulf %86, %85 : vector<8x32xf32>
    %88 = math.tanh %87 : vector<8x32xf32>
    %cst_31 = arith.constant 1.000000e+00 : f32
    %89 = vector.broadcast %cst_31 : f32 to vector<8x32xf32>
    %90 = arith.addf %88, %89 : vector<8x32xf32>
    %cst_32 = arith.constant 5.000000e-01 : f32
    %91 = vector.broadcast %cst_32 : f32 to vector<8x32xf32>
    %92 = arith.mulf %91, %90 : vector<8x32xf32>
    %93 = vector.extract_strided_slice %70 {offsets = [0, 64], sizes = [8, 32], strides = [1, 1]} : vector<8x96xf32> to vector<8x32xf32>
    %94 = vector.extract_strided_slice %72 {offsets = [0, 64], sizes = [8, 32], strides = [1, 1]} : vector<8x96xf32> to vector<8x32xf32>
    %95 = arith.mulf %82, %94 : vector<8x32xf32>
    %96 = arith.addf %93, %95 : vector<8x32xf32>
    %97 = math.tanh %96 : vector<8x32xf32>
    %cst_33 = arith.constant 1.000000e+00 : f32
    %98 = vector.broadcast %cst_33 : f32 to vector<8x32xf32>
    %99 = arith.subf %98, %92 : vector<8x32xf32>
    %100 = arith.mulf %99, %97 : vector<8x32xf32>
    %101 = arith.mulf %92, %35 : vector<8x32xf32>
    %102 = arith.addf %100, %101 : vector<8x32xf32>
    %cst_34 = arith.constant dense<0.000000e+00> : vector<8x128xf32>
    %103 = tpu.matmul %102, %14, %cst_34 {dimension_numbers = #tpu.dot_dimension_numbers<[1], [0], [0], [1], [0, 0, 1, 1], [], []>} : vector<8x32xf32>, vector<32x128xf32>, vector<8x128xf32> -> vector<8x128xf32>
    %104 = arith.addf %103, %28 : vector<8x128xf32>
    %c0_35 = arith.constant 0 : index
    %c0_36 = arith.constant 0 : index
    %105 = vector.load %arg7[%c0_35, %c0_36] : memref<64x128xf32, #tpu.memory_space<vmem>>, vector<8x128xf32>
    tpu.vector_store %arg7[%c0_35, %c0_36], %104 {strides = array<i32>} : memref<64x128xf32, #tpu.memory_space<vmem>>, vector<8x128xf32>,
    %106 = vector.extract_strided_slice %31 {offsets = [8, 0], sizes = [8, 96], strides = [1, 1]} : vector<64x96xf32> to vector<8x96xf32>
    %cst_37 = arith.constant dense<0.000000e+00> : vector<8x96xf32>
    %107 = tpu.matmul %68, %10, %cst_37 {dimension_numbers = #tpu.dot_dimension_numbers<[1], [0], [0], [1], [0, 0, 1, 1], [], []>} : vector<8x32xf32>, vector<32x96xf32>, vector<8x96xf32> -> vector<8x96xf32>
    %108 = arith.addf %107, %19 : vector<8x96xf32>
    %109 = vector.extract_strided_slice %106 {offsets = [0, 0], sizes = [8, 32], strides = [1, 1]} : vector<8x96xf32> to vector<8x32xf32>
    %110 = vector.extract_strided_slice %108 {offsets = [0, 0], sizes = [8, 32], strides = [1, 1]} : vector<8x96xf32> to vector<8x32xf32>
    %111 = arith.addf %109, %110 : vector<8x32xf32>
    %cst_38 = arith.constant 5.000000e-01 : f32
    %112 = vector.broadcast %cst_38 : f32 to vector<8x32xf32>
    %113 = arith.mulf %112, %111 : vector<8x32xf32>
    %114 = math.tanh %113 : vector<8x32xf32>
    %cst_39 = arith.constant 1.000000e+00 : f32
    %115 = vector.broadcast %cst_39 : f32 to vector<8x32xf32>
    %116 = arith.addf %114, %115 : vector<8x32xf32>
    %cst_40 = arith.constant 5.000000e-01 : f32
    %117 = vector.broadcast %cst_40 : f32 to vector<8x32xf32>
    %118 = arith.mulf %117, %116 : vector<8x32xf32>
    %119 = vector.extract_strided_slice %106 {offsets = [0, 32], sizes = [8, 32], strides = [1, 1]} : vector<8x96xf32> to vector<8x32xf32>
    %120 = vector.extract_strided_slice %108 {offsets = [0, 32], sizes = [8, 32], strides = [1, 1]} : vector<8x96xf32> to vector<8x32xf32>
    %121 = arith.addf %119, %120 : vector<8x32xf32>
    %cst_41 = arith.constant 5.000000e-01 : f32
    %122 = vector.broadcast %cst_41 : f32 to vector<8x32xf32>
    %123 = arith.mulf %122, %121 : vector<8x32xf32>
    %124 = math.tanh %123 : vector<8x32xf32>
    %cst_42 = arith.constant 1.000000e+00 : f32
    %125 = vector.broadcast %cst_42 : f32 to vector<8x32xf32>
    %126 = arith.addf %124, %125 : vector<8x32xf32>
    %cst_43 = arith.constant 5.000000e-01 : f32
    %127 = vector.broadcast %cst_43 : f32 to vector<8x32xf32>
    %128 = arith.mulf %127, %126 : vector<8x32xf32>
    %129 = vector.extract_strided_slice %106 {offsets = [0, 64], sizes = [8, 32], strides = [1, 1]} : vector<8x96xf32> to vector<8x32xf32>
    %130 = vector.extract_strided_slice %108 {offsets = [0, 64], sizes = [8, 32], strides = [1, 1]} : vector<8x96xf32> to vector<8x32xf32>
    %131 = arith.mulf %118, %130 : vector<8x32xf32>
    %132 = arith.addf %129, %131 : vector<8x32xf32>
    %133 = math.tanh %132 : vector<8x32xf32>
    %cst_44 = arith.constant 1.000000e+00 : f32
    %134 = vector.broadcast %cst_44 : f32 to vector<8x32xf32>
    %135 = arith.subf %134, %128 : vector<8x32xf32>
    %136 = arith.mulf %135, %133 : vector<8x32xf32>
    %137 = arith.mulf %128, %68 : vector<8x32xf32>
    %138 = arith.addf %136, %137 : vector<8x32xf32>
    %cst_45 = arith.constant dense<0.000000e+00> : vector<8x96xf32>
    %139 = tpu.matmul %138, %12, %cst_45 {dimension_numbers = #tpu.dot_dimension_numbers<[1], [0], [0], [1], [0, 0, 1, 1], [], []>} : vector<8x32xf32>, vector<32x96xf32>, vector<8x96xf32> -> vector<8x96xf32>
    %140 = arith.addf %139, %22 : vector<8x96xf32>
    %cst_46 = arith.constant dense<0.000000e+00> : vector<8x96xf32>
    %141 = tpu.matmul %102, %13, %cst_46 {dimension_numbers = #tpu.dot_dimension_numbers<[1], [0], [0], [1], [0, 0, 1, 1], [], []>} : vector<8x32xf32>, vector<32x96xf32>, vector<8x96xf32> -> vector<8x96xf32>
    %142 = arith.addf %141, %25 : vector<8x96xf32>
    %143 = vector.extract_strided_slice %140 {offsets = [0, 0], sizes = [8, 32], strides = [1, 1]} : vector<8x96xf32> to vector<8x32xf32>
    %144 = vector.extract_strided_slice %142 {offsets = [0, 0], sizes = [8, 32], strides = [1, 1]} : vector<8x96xf32> to vector<8x32xf32>
    %145 = arith.addf %143, %144 : vector<8x32xf32>
    %cst_47 = arith.constant 5.000000e-01 : f32
    %146 = vector.broadcast %cst_47 : f32 to vector<8x32xf32>
    %147 = arith.mulf %146, %145 : vector<8x32xf32>
    %148 = math.tanh %147 : vector<8x32xf32>
    %cst_48 = arith.constant 1.000000e+00 : f32
    %149 = vector.broadcast %cst_48 : f32 to vector<8x32xf32>
    %150 = arith.addf %148, %149 : vector<8x32xf32>
    %cst_49 = arith.constant 5.000000e-01 : f32
    %151 = vector.broadcast %cst_49 : f32 to vector<8x32xf32>
    %152 = arith.mulf %151, %150 : vector<8x32xf32>
    %153 = vector.extract_strided_slice %140 {offsets = [0, 32], sizes = [8, 32], strides = [1, 1]} : vector<8x96xf32> to vector<8x32xf32>
    %154 = vector.extract_strided_slice %142 {offsets = [0, 32], sizes = [8, 32], strides = [1, 1]} : vector<8x96xf32> to vector<8x32xf32>
    %155 = arith.addf %153, %154 : vector<8x32xf32>
    %cst_50 = arith.constant 5.000000e-01 : f32
    %156 = vector.broadcast %cst_50 : f32 to vector<8x32xf32>
    %157 = arith.mulf %156, %155 : vector<8x32xf32>
    %158 = math.tanh %157 : vector<8x32xf32>
    %cst_51 = arith.constant 1.000000e+00 : f32
    %159 = vector.broadcast %cst_51 : f32 to vector<8x32xf32>
    %160 = arith.addf %158, %159 : vector<8x32xf32>
    %cst_52 = arith.constant 5.000000e-01 : f32
    %161 = vector.broadcast %cst_52 : f32 to vector<8x32xf32>
    %162 = arith.mulf %161, %160 : vector<8x32xf32>
    %163 = vector.extract_strided_slice %140 {offsets = [0, 64], sizes = [8, 32], strides = [1, 1]} : vector<8x96xf32> to vector<8x32xf32>
    %164 = vector.extract_strided_slice %142 {offsets = [0, 64], sizes = [8, 32], strides = [1, 1]} : vector<8x96xf32> to vector<8x32xf32>
    %165 = arith.mulf %152, %164 : vector<8x32xf32>
    %166 = arith.addf %163, %165 : vector<8x32xf32>
    %167 = math.tanh %166 : vector<8x32xf32>
    %cst_53 = arith.constant 1.000000e+00 : f32
    %168 = vector.broadcast %cst_53 : f32 to vector<8x32xf32>
    %169 = arith.subf %168, %162 : vector<8x32xf32>
    %170 = arith.mulf %169, %167 : vector<8x32xf32>
    %171 = arith.mulf %162, %102 : vector<8x32xf32>
    %172 = arith.addf %170, %171 : vector<8x32xf32>
    %cst_54 = arith.constant dense<0.000000e+00> : vector<8x128xf32>
    %173 = tpu.matmul %172, %14, %cst_54 {dimension_numbers = #tpu.dot_dimension_numbers<[1], [0], [0], [1], [0, 0, 1, 1], [], []>} : vector<8x32xf32>, vector<32x128xf32>, vector<8x128xf32> -> vector<8x128xf32>
    %174 = arith.addf %173, %28 : vector<8x128xf32>
    %c8 = arith.constant 8 : index
    %c0_55 = arith.constant 0 : index
    %175 = vector.load %arg7[%c8, %c0_55] : memref<64x128xf32, #tpu.memory_space<vmem>>, vector<8x128xf32>
    tpu.vector_store %arg7[%c8, %c0_55], %174 {strides = array<i32>} : memref<64x128xf32, #tpu.memory_space<vmem>>, vector<8x128xf32>,
    %176 = vector.extract_strided_slice %31 {offsets = [16, 0], sizes = [8, 96], strides = [1, 1]} : vector<64x96xf32> to vector<8x96xf32>
    %cst_56 = arith.constant dense<0.000000e+00> : vector<8x96xf32>
    %177 = tpu.matmul %138, %10, %cst_56 {dimension_numbers = #tpu.dot_dimension_numbers<[1], [0], [0], [1], [0, 0, 1, 1], [], []>} : vector<8x32xf32>, vector<32x96xf32>, vector<8x96xf32> -> vector<8x96xf32>
    %178 = arith.addf %177, %19 : vector<8x96xf32>
    %179 = vector.extract_strided_slice %176 {offsets = [0, 0], sizes = [8, 32], strides = [1, 1]} : vector<8x96xf32> to vector<8x32xf32>
    %180 = vector.extract_strided_slice %178 {offsets = [0, 0], sizes = [8, 32], strides = [1, 1]} : vector<8x96xf32> to vector<8x32xf32>
    %181 = arith.addf %179, %180 : vector<8x32xf32>
    %cst_57 = arith.constant 5.000000e-01 : f32
    %182 = vector.broadcast %cst_57 : f32 to vector<8x32xf32>
    %183 = arith.mulf %182, %181 : vector<8x32xf32>
    %184 = math.tanh %183 : vector<8x32xf32>
    %cst_58 = arith.constant 1.000000e+00 : f32
    %185 = vector.broadcast %cst_58 : f32 to vector<8x32xf32>
    %186 = arith.addf %184, %185 : vector<8x32xf32>
    %cst_59 = arith.constant 5.000000e-01 : f32
    %187 = vector.broadcast %cst_59 : f32 to vector<8x32xf32>
    %188 = arith.mulf %187, %186 : vector<8x32xf32>
    %189 = vector.extract_strided_slice %176 {offsets = [0, 32], sizes = [8, 32], strides = [1, 1]} : vector<8x96xf32> to vector<8x32xf32>
    %190 = vector.extract_strided_slice %178 {offsets = [0, 32], sizes = [8, 32], strides = [1, 1]} : vector<8x96xf32> to vector<8x32xf32>
    %191 = arith.addf %189, %190 : vector<8x32xf32>
    %cst_60 = arith.constant 5.000000e-01 : f32
    %192 = vector.broadcast %cst_60 : f32 to vector<8x32xf32>
    %193 = arith.mulf %192, %191 : vector<8x32xf32>
    %194 = math.tanh %193 : vector<8x32xf32>
    %cst_61 = arith.constant 1.000000e+00 : f32
    %195 = vector.broadcast %cst_61 : f32 to vector<8x32xf32>
    %196 = arith.addf %194, %195 : vector<8x32xf32>
    %cst_62 = arith.constant 5.000000e-01 : f32
    %197 = vector.broadcast %cst_62 : f32 to vector<8x32xf32>
    %198 = arith.mulf %197, %196 : vector<8x32xf32>
    %199 = vector.extract_strided_slice %176 {offsets = [0, 64], sizes = [8, 32], strides = [1, 1]} : vector<8x96xf32> to vector<8x32xf32>
    %200 = vector.extract_strided_slice %178 {offsets = [0, 64], sizes = [8, 32], strides = [1, 1]} : vector<8x96xf32> to vector<8x32xf32>
    %201 = arith.mulf %188, %200 : vector<8x32xf32>
    %202 = arith.addf %199, %201 : vector<8x32xf32>
    %203 = math.tanh %202 : vector<8x32xf32>
    %cst_63 = arith.constant 1.000000e+00 : f32
    %204 = vector.broadcast %cst_63 : f32 to vector<8x32xf32>
    %205 = arith.subf %204, %198 : vector<8x32xf32>
    %206 = arith.mulf %205, %203 : vector<8x32xf32>
    %207 = arith.mulf %198, %138 : vector<8x32xf32>
    %208 = arith.addf %206, %207 : vector<8x32xf32>
    %cst_64 = arith.constant dense<0.000000e+00> : vector<8x96xf32>
    %209 = tpu.matmul %208, %12, %cst_64 {dimension_numbers = #tpu.dot_dimension_numbers<[1], [0], [0], [1], [0, 0, 1, 1], [], []>} : vector<8x32xf32>, vector<32x96xf32>, vector<8x96xf32> -> vector<8x96xf32>
    %210 = arith.addf %209, %22 : vector<8x96xf32>
    %cst_65 = arith.constant dense<0.000000e+00> : vector<8x96xf32>
    %211 = tpu.matmul %172, %13, %cst_65 {dimension_numbers = #tpu.dot_dimension_numbers<[1], [0], [0], [1], [0, 0, 1, 1], [], []>} : vector<8x32xf32>, vector<32x96xf32>, vector<8x96xf32> -> vector<8x96xf32>
    %212 = arith.addf %211, %25 : vector<8x96xf32>
    %213 = vector.extract_strided_slice %210 {offsets = [0, 0], sizes = [8, 32], strides = [1, 1]} : vector<8x96xf32> to vector<8x32xf32>
    %214 = vector.extract_strided_slice %212 {offsets = [0, 0], sizes = [8, 32], strides = [1, 1]} : vector<8x96xf32> to vector<8x32xf32>
    %215 = arith.addf %213, %214 : vector<8x32xf32>
    %cst_66 = arith.constant 5.000000e-01 : f32
    %216 = vector.broadcast %cst_66 : f32 to vector<8x32xf32>
    %217 = arith.mulf %216, %215 : vector<8x32xf32>
    %218 = math.tanh %217 : vector<8x32xf32>
    %cst_67 = arith.constant 1.000000e+00 : f32
    %219 = vector.broadcast %cst_67 : f32 to vector<8x32xf32>
    %220 = arith.addf %218, %219 : vector<8x32xf32>
    %cst_68 = arith.constant 5.000000e-01 : f32
    %221 = vector.broadcast %cst_68 : f32 to vector<8x32xf32>
    %222 = arith.mulf %221, %220 : vector<8x32xf32>
    %223 = vector.extract_strided_slice %210 {offsets = [0, 32], sizes = [8, 32], strides = [1, 1]} : vector<8x96xf32> to vector<8x32xf32>
    %224 = vector.extract_strided_slice %212 {offsets = [0, 32], sizes = [8, 32], strides = [1, 1]} : vector<8x96xf32> to vector<8x32xf32>
    %225 = arith.addf %223, %224 : vector<8x32xf32>
    %cst_69 = arith.constant 5.000000e-01 : f32
    %226 = vector.broadcast %cst_69 : f32 to vector<8x32xf32>
    %227 = arith.mulf %226, %225 : vector<8x32xf32>
    %228 = math.tanh %227 : vector<8x32xf32>
    %cst_70 = arith.constant 1.000000e+00 : f32
    %229 = vector.broadcast %cst_70 : f32 to vector<8x32xf32>
    %230 = arith.addf %228, %229 : vector<8x32xf32>
    %cst_71 = arith.constant 5.000000e-01 : f32
    %231 = vector.broadcast %cst_71 : f32 to vector<8x32xf32>
    %232 = arith.mulf %231, %230 : vector<8x32xf32>
    %233 = vector.extract_strided_slice %210 {offsets = [0, 64], sizes = [8, 32], strides = [1, 1]} : vector<8x96xf32> to vector<8x32xf32>
    %234 = vector.extract_strided_slice %212 {offsets = [0, 64], sizes = [8, 32], strides = [1, 1]} : vector<8x96xf32> to vector<8x32xf32>
    %235 = arith.mulf %222, %234 : vector<8x32xf32>
    %236 = arith.addf %233, %235 : vector<8x32xf32>
    %237 = math.tanh %236 : vector<8x32xf32>
    %cst_72 = arith.constant 1.000000e+00 : f32
    %238 = vector.broadcast %cst_72 : f32 to vector<8x32xf32>
    %239 = arith.subf %238, %232 : vector<8x32xf32>
    %240 = arith.mulf %239, %237 : vector<8x32xf32>
    %241 = arith.mulf %232, %172 : vector<8x32xf32>
    %242 = arith.addf %240, %241 : vector<8x32xf32>
    %cst_73 = arith.constant dense<0.000000e+00> : vector<8x128xf32>
    %243 = tpu.matmul %242, %14, %cst_73 {dimension_numbers = #tpu.dot_dimension_numbers<[1], [0], [0], [1], [0, 0, 1, 1], [], []>} : vector<8x32xf32>, vector<32x128xf32>, vector<8x128xf32> -> vector<8x128xf32>
    %244 = arith.addf %243, %28 : vector<8x128xf32>
    %c16 = arith.constant 16 : index
    %c0_74 = arith.constant 0 : index
    %245 = vector.load %arg7[%c16, %c0_74] : memref<64x128xf32, #tpu.memory_space<vmem>>, vector<8x128xf32>
    tpu.vector_store %arg7[%c16, %c0_74], %244 {strides = array<i32>} : memref<64x128xf32, #tpu.memory_space<vmem>>, vector<8x128xf32>,
    %246 = vector.extract_strided_slice %31 {offsets = [24, 0], sizes = [8, 96], strides = [1, 1]} : vector<64x96xf32> to vector<8x96xf32>
    %cst_75 = arith.constant dense<0.000000e+00> : vector<8x96xf32>
    %247 = tpu.matmul %208, %10, %cst_75 {dimension_numbers = #tpu.dot_dimension_numbers<[1], [0], [0], [1], [0, 0, 1, 1], [], []>} : vector<8x32xf32>, vector<32x96xf32>, vector<8x96xf32> -> vector<8x96xf32>
    %248 = arith.addf %247, %19 : vector<8x96xf32>
    %249 = vector.extract_strided_slice %246 {offsets = [0, 0], sizes = [8, 32], strides = [1, 1]} : vector<8x96xf32> to vector<8x32xf32>
    %250 = vector.extract_strided_slice %248 {offsets = [0, 0], sizes = [8, 32], strides = [1, 1]} : vector<8x96xf32> to vector<8x32xf32>
    %251 = arith.addf %249, %250 : vector<8x32xf32>
    %cst_76 = arith.constant 5.000000e-01 : f32
    %252 = vector.broadcast %cst_76 : f32 to vector<8x32xf32>
    %253 = arith.mulf %252, %251 : vector<8x32xf32>
    %254 = math.tanh %253 : vector<8x32xf32>
    %cst_77 = arith.constant 1.000000e+00 : f32
    %255 = vector.broadcast %cst_77 : f32 to vector<8x32xf32>
    %256 = arith.addf %254, %255 : vector<8x32xf32>
    %cst_78 = arith.constant 5.000000e-01 : f32
    %257 = vector.broadcast %cst_78 : f32 to vector<8x32xf32>
    %258 = arith.mulf %257, %256 : vector<8x32xf32>
    %259 = vector.extract_strided_slice %246 {offsets = [0, 32], sizes = [8, 32], strides = [1, 1]} : vector<8x96xf32> to vector<8x32xf32>
    %260 = vector.extract_strided_slice %248 {offsets = [0, 32], sizes = [8, 32], strides = [1, 1]} : vector<8x96xf32> to vector<8x32xf32>
    %261 = arith.addf %259, %260 : vector<8x32xf32>
    %cst_79 = arith.constant 5.000000e-01 : f32
    %262 = vector.broadcast %cst_79 : f32 to vector<8x32xf32>
    %263 = arith.mulf %262, %261 : vector<8x32xf32>
    %264 = math.tanh %263 : vector<8x32xf32>
    %cst_80 = arith.constant 1.000000e+00 : f32
    %265 = vector.broadcast %cst_80 : f32 to vector<8x32xf32>
    %266 = arith.addf %264, %265 : vector<8x32xf32>
    %cst_81 = arith.constant 5.000000e-01 : f32
    %267 = vector.broadcast %cst_81 : f32 to vector<8x32xf32>
    %268 = arith.mulf %267, %266 : vector<8x32xf32>
    %269 = vector.extract_strided_slice %246 {offsets = [0, 64], sizes = [8, 32], strides = [1, 1]} : vector<8x96xf32> to vector<8x32xf32>
    %270 = vector.extract_strided_slice %248 {offsets = [0, 64], sizes = [8, 32], strides = [1, 1]} : vector<8x96xf32> to vector<8x32xf32>
    %271 = arith.mulf %258, %270 : vector<8x32xf32>
    %272 = arith.addf %269, %271 : vector<8x32xf32>
    %273 = math.tanh %272 : vector<8x32xf32>
    %cst_82 = arith.constant 1.000000e+00 : f32
    %274 = vector.broadcast %cst_82 : f32 to vector<8x32xf32>
    %275 = arith.subf %274, %268 : vector<8x32xf32>
    %276 = arith.mulf %275, %273 : vector<8x32xf32>
    %277 = arith.mulf %268, %208 : vector<8x32xf32>
    %278 = arith.addf %276, %277 : vector<8x32xf32>
    %cst_83 = arith.constant dense<0.000000e+00> : vector<8x96xf32>
    %279 = tpu.matmul %278, %12, %cst_83 {dimension_numbers = #tpu.dot_dimension_numbers<[1], [0], [0], [1], [0, 0, 1, 1], [], []>} : vector<8x32xf32>, vector<32x96xf32>, vector<8x96xf32> -> vector<8x96xf32>
    %280 = arith.addf %279, %22 : vector<8x96xf32>
    %cst_84 = arith.constant dense<0.000000e+00> : vector<8x96xf32>
    %281 = tpu.matmul %242, %13, %cst_84 {dimension_numbers = #tpu.dot_dimension_numbers<[1], [0], [0], [1], [0, 0, 1, 1], [], []>} : vector<8x32xf32>, vector<32x96xf32>, vector<8x96xf32> -> vector<8x96xf32>
    %282 = arith.addf %281, %25 : vector<8x96xf32>
    %283 = vector.extract_strided_slice %280 {offsets = [0, 0], sizes = [8, 32], strides = [1, 1]} : vector<8x96xf32> to vector<8x32xf32>
    %284 = vector.extract_strided_slice %282 {offsets = [0, 0], sizes = [8, 32], strides = [1, 1]} : vector<8x96xf32> to vector<8x32xf32>
    %285 = arith.addf %283, %284 : vector<8x32xf32>
    %cst_85 = arith.constant 5.000000e-01 : f32
    %286 = vector.broadcast %cst_85 : f32 to vector<8x32xf32>
    %287 = arith.mulf %286, %285 : vector<8x32xf32>
    %288 = math.tanh %287 : vector<8x32xf32>
    %cst_86 = arith.constant 1.000000e+00 : f32
    %289 = vector.broadcast %cst_86 : f32 to vector<8x32xf32>
    %290 = arith.addf %288, %289 : vector<8x32xf32>
    %cst_87 = arith.constant 5.000000e-01 : f32
    %291 = vector.broadcast %cst_87 : f32 to vector<8x32xf32>
    %292 = arith.mulf %291, %290 : vector<8x32xf32>
    %293 = vector.extract_strided_slice %280 {offsets = [0, 32], sizes = [8, 32], strides = [1, 1]} : vector<8x96xf32> to vector<8x32xf32>
    %294 = vector.extract_strided_slice %282 {offsets = [0, 32], sizes = [8, 32], strides = [1, 1]} : vector<8x96xf32> to vector<8x32xf32>
    %295 = arith.addf %293, %294 : vector<8x32xf32>
    %cst_88 = arith.constant 5.000000e-01 : f32
    %296 = vector.broadcast %cst_88 : f32 to vector<8x32xf32>
    %297 = arith.mulf %296, %295 : vector<8x32xf32>
    %298 = math.tanh %297 : vector<8x32xf32>
    %cst_89 = arith.constant 1.000000e+00 : f32
    %299 = vector.broadcast %cst_89 : f32 to vector<8x32xf32>
    %300 = arith.addf %298, %299 : vector<8x32xf32>
    %cst_90 = arith.constant 5.000000e-01 : f32
    %301 = vector.broadcast %cst_90 : f32 to vector<8x32xf32>
    %302 = arith.mulf %301, %300 : vector<8x32xf32>
    %303 = vector.extract_strided_slice %280 {offsets = [0, 64], sizes = [8, 32], strides = [1, 1]} : vector<8x96xf32> to vector<8x32xf32>
    %304 = vector.extract_strided_slice %282 {offsets = [0, 64], sizes = [8, 32], strides = [1, 1]} : vector<8x96xf32> to vector<8x32xf32>
    %305 = arith.mulf %292, %304 : vector<8x32xf32>
    %306 = arith.addf %303, %305 : vector<8x32xf32>
    %307 = math.tanh %306 : vector<8x32xf32>
    %cst_91 = arith.constant 1.000000e+00 : f32
    %308 = vector.broadcast %cst_91 : f32 to vector<8x32xf32>
    %309 = arith.subf %308, %302 : vector<8x32xf32>
    %310 = arith.mulf %309, %307 : vector<8x32xf32>
    %311 = arith.mulf %302, %242 : vector<8x32xf32>
    %312 = arith.addf %310, %311 : vector<8x32xf32>
    %cst_92 = arith.constant dense<0.000000e+00> : vector<8x128xf32>
    %313 = tpu.matmul %312, %14, %cst_92 {dimension_numbers = #tpu.dot_dimension_numbers<[1], [0], [0], [1], [0, 0, 1, 1], [], []>} : vector<8x32xf32>, vector<32x128xf32>, vector<8x128xf32> -> vector<8x128xf32>
    %314 = arith.addf %313, %28 : vector<8x128xf32>
    %c24 = arith.constant 24 : index
    %c0_93 = arith.constant 0 : index
    %315 = vector.load %arg7[%c24, %c0_93] : memref<64x128xf32, #tpu.memory_space<vmem>>, vector<8x128xf32>
    tpu.vector_store %arg7[%c24, %c0_93], %314 {strides = array<i32>} : memref<64x128xf32, #tpu.memory_space<vmem>>, vector<8x128xf32>,
    %316 = vector.extract_strided_slice %31 {offsets = [32, 0], sizes = [8, 96], strides = [1, 1]} : vector<64x96xf32> to vector<8x96xf32>
    %cst_94 = arith.constant dense<0.000000e+00> : vector<8x96xf32>
    %317 = tpu.matmul %278, %10, %cst_94 {dimension_numbers = #tpu.dot_dimension_numbers<[1], [0], [0], [1], [0, 0, 1, 1], [], []>} : vector<8x32xf32>, vector<32x96xf32>, vector<8x96xf32> -> vector<8x96xf32>
    %318 = arith.addf %317, %19 : vector<8x96xf32>
    %319 = vector.extract_strided_slice %316 {offsets = [0, 0], sizes = [8, 32], strides = [1, 1]} : vector<8x96xf32> to vector<8x32xf32>
    %320 = vector.extract_strided_slice %318 {offsets = [0, 0], sizes = [8, 32], strides = [1, 1]} : vector<8x96xf32> to vector<8x32xf32>
    %321 = arith.addf %319, %320 : vector<8x32xf32>
    %cst_95 = arith.constant 5.000000e-01 : f32
    %322 = vector.broadcast %cst_95 : f32 to vector<8x32xf32>
    %323 = arith.mulf %322, %321 : vector<8x32xf32>
    %324 = math.tanh %323 : vector<8x32xf32>
    %cst_96 = arith.constant 1.000000e+00 : f32
    %325 = vector.broadcast %cst_96 : f32 to vector<8x32xf32>
    %326 = arith.addf %324, %325 : vector<8x32xf32>
    %cst_97 = arith.constant 5.000000e-01 : f32
    %327 = vector.broadcast %cst_97 : f32 to vector<8x32xf32>
    %328 = arith.mulf %327, %326 : vector<8x32xf32>
    %329 = vector.extract_strided_slice %316 {offsets = [0, 32], sizes = [8, 32], strides = [1, 1]} : vector<8x96xf32> to vector<8x32xf32>
    %330 = vector.extract_strided_slice %318 {offsets = [0, 32], sizes = [8, 32], strides = [1, 1]} : vector<8x96xf32> to vector<8x32xf32>
    %331 = arith.addf %329, %330 : vector<8x32xf32>
    %cst_98 = arith.constant 5.000000e-01 : f32
    %332 = vector.broadcast %cst_98 : f32 to vector<8x32xf32>
    %333 = arith.mulf %332, %331 : vector<8x32xf32>
    %334 = math.tanh %333 : vector<8x32xf32>
    %cst_99 = arith.constant 1.000000e+00 : f32
    %335 = vector.broadcast %cst_99 : f32 to vector<8x32xf32>
    %336 = arith.addf %334, %335 : vector<8x32xf32>
    %cst_100 = arith.constant 5.000000e-01 : f32
    %337 = vector.broadcast %cst_100 : f32 to vector<8x32xf32>
    %338 = arith.mulf %337, %336 : vector<8x32xf32>
    %339 = vector.extract_strided_slice %316 {offsets = [0, 64], sizes = [8, 32], strides = [1, 1]} : vector<8x96xf32> to vector<8x32xf32>
    %340 = vector.extract_strided_slice %318 {offsets = [0, 64], sizes = [8, 32], strides = [1, 1]} : vector<8x96xf32> to vector<8x32xf32>
    %341 = arith.mulf %328, %340 : vector<8x32xf32>
    %342 = arith.addf %339, %341 : vector<8x32xf32>
    %343 = math.tanh %342 : vector<8x32xf32>
    %cst_101 = arith.constant 1.000000e+00 : f32
    %344 = vector.broadcast %cst_101 : f32 to vector<8x32xf32>
    %345 = arith.subf %344, %338 : vector<8x32xf32>
    %346 = arith.mulf %345, %343 : vector<8x32xf32>
    %347 = arith.mulf %338, %278 : vector<8x32xf32>
    %348 = arith.addf %346, %347 : vector<8x32xf32>
    %cst_102 = arith.constant dense<0.000000e+00> : vector<8x96xf32>
    %349 = tpu.matmul %348, %12, %cst_102 {dimension_numbers = #tpu.dot_dimension_numbers<[1], [0], [0], [1], [0, 0, 1, 1], [], []>} : vector<8x32xf32>, vector<32x96xf32>, vector<8x96xf32> -> vector<8x96xf32>
    %350 = arith.addf %349, %22 : vector<8x96xf32>
    %cst_103 = arith.constant dense<0.000000e+00> : vector<8x96xf32>
    %351 = tpu.matmul %312, %13, %cst_103 {dimension_numbers = #tpu.dot_dimension_numbers<[1], [0], [0], [1], [0, 0, 1, 1], [], []>} : vector<8x32xf32>, vector<32x96xf32>, vector<8x96xf32> -> vector<8x96xf32>
    %352 = arith.addf %351, %25 : vector<8x96xf32>
    %353 = vector.extract_strided_slice %350 {offsets = [0, 0], sizes = [8, 32], strides = [1, 1]} : vector<8x96xf32> to vector<8x32xf32>
    %354 = vector.extract_strided_slice %352 {offsets = [0, 0], sizes = [8, 32], strides = [1, 1]} : vector<8x96xf32> to vector<8x32xf32>
    %355 = arith.addf %353, %354 : vector<8x32xf32>
    %cst_104 = arith.constant 5.000000e-01 : f32
    %356 = vector.broadcast %cst_104 : f32 to vector<8x32xf32>
    %357 = arith.mulf %356, %355 : vector<8x32xf32>
    %358 = math.tanh %357 : vector<8x32xf32>
    %cst_105 = arith.constant 1.000000e+00 : f32
    %359 = vector.broadcast %cst_105 : f32 to vector<8x32xf32>
    %360 = arith.addf %358, %359 : vector<8x32xf32>
    %cst_106 = arith.constant 5.000000e-01 : f32
    %361 = vector.broadcast %cst_106 : f32 to vector<8x32xf32>
    %362 = arith.mulf %361, %360 : vector<8x32xf32>
    %363 = vector.extract_strided_slice %350 {offsets = [0, 32], sizes = [8, 32], strides = [1, 1]} : vector<8x96xf32> to vector<8x32xf32>
    %364 = vector.extract_strided_slice %352 {offsets = [0, 32], sizes = [8, 32], strides = [1, 1]} : vector<8x96xf32> to vector<8x32xf32>
    %365 = arith.addf %363, %364 : vector<8x32xf32>
    %cst_107 = arith.constant 5.000000e-01 : f32
    %366 = vector.broadcast %cst_107 : f32 to vector<8x32xf32>
    %367 = arith.mulf %366, %365 : vector<8x32xf32>
    %368 = math.tanh %367 : vector<8x32xf32>
    %cst_108 = arith.constant 1.000000e+00 : f32
    %369 = vector.broadcast %cst_108 : f32 to vector<8x32xf32>
    %370 = arith.addf %368, %369 : vector<8x32xf32>
    %cst_109 = arith.constant 5.000000e-01 : f32
    %371 = vector.broadcast %cst_109 : f32 to vector<8x32xf32>
    %372 = arith.mulf %371, %370 : vector<8x32xf32>
    %373 = vector.extract_strided_slice %350 {offsets = [0, 64], sizes = [8, 32], strides = [1, 1]} : vector<8x96xf32> to vector<8x32xf32>
    %374 = vector.extract_strided_slice %352 {offsets = [0, 64], sizes = [8, 32], strides = [1, 1]} : vector<8x96xf32> to vector<8x32xf32>
    %375 = arith.mulf %362, %374 : vector<8x32xf32>
    %376 = arith.addf %373, %375 : vector<8x32xf32>
    %377 = math.tanh %376 : vector<8x32xf32>
    %cst_110 = arith.constant 1.000000e+00 : f32
    %378 = vector.broadcast %cst_110 : f32 to vector<8x32xf32>
    %379 = arith.subf %378, %372 : vector<8x32xf32>
    %380 = arith.mulf %379, %377 : vector<8x32xf32>
    %381 = arith.mulf %372, %312 : vector<8x32xf32>
    %382 = arith.addf %380, %381 : vector<8x32xf32>
    %cst_111 = arith.constant dense<0.000000e+00> : vector<8x128xf32>
    %383 = tpu.matmul %382, %14, %cst_111 {dimension_numbers = #tpu.dot_dimension_numbers<[1], [0], [0], [1], [0, 0, 1, 1], [], []>} : vector<8x32xf32>, vector<32x128xf32>, vector<8x128xf32> -> vector<8x128xf32>
    %384 = arith.addf %383, %28 : vector<8x128xf32>
    %c32 = arith.constant 32 : index
    %c0_112 = arith.constant 0 : index
    %385 = vector.load %arg7[%c32, %c0_112] : memref<64x128xf32, #tpu.memory_space<vmem>>, vector<8x128xf32>
    tpu.vector_store %arg7[%c32, %c0_112], %384 {strides = array<i32>} : memref<64x128xf32, #tpu.memory_space<vmem>>, vector<8x128xf32>,
    %386 = vector.extract_strided_slice %31 {offsets = [40, 0], sizes = [8, 96], strides = [1, 1]} : vector<64x96xf32> to vector<8x96xf32>
    %cst_113 = arith.constant dense<0.000000e+00> : vector<8x96xf32>
    %387 = tpu.matmul %348, %10, %cst_113 {dimension_numbers = #tpu.dot_dimension_numbers<[1], [0], [0], [1], [0, 0, 1, 1], [], []>} : vector<8x32xf32>, vector<32x96xf32>, vector<8x96xf32> -> vector<8x96xf32>
    %388 = arith.addf %387, %19 : vector<8x96xf32>
    %389 = vector.extract_strided_slice %386 {offsets = [0, 0], sizes = [8, 32], strides = [1, 1]} : vector<8x96xf32> to vector<8x32xf32>
    %390 = vector.extract_strided_slice %388 {offsets = [0, 0], sizes = [8, 32], strides = [1, 1]} : vector<8x96xf32> to vector<8x32xf32>
    %391 = arith.addf %389, %390 : vector<8x32xf32>
    %cst_114 = arith.constant 5.000000e-01 : f32
    %392 = vector.broadcast %cst_114 : f32 to vector<8x32xf32>
    %393 = arith.mulf %392, %391 : vector<8x32xf32>
    %394 = math.tanh %393 : vector<8x32xf32>
    %cst_115 = arith.constant 1.000000e+00 : f32
    %395 = vector.broadcast %cst_115 : f32 to vector<8x32xf32>
    %396 = arith.addf %394, %395 : vector<8x32xf32>
    %cst_116 = arith.constant 5.000000e-01 : f32
    %397 = vector.broadcast %cst_116 : f32 to vector<8x32xf32>
    %398 = arith.mulf %397, %396 : vector<8x32xf32>
    %399 = vector.extract_strided_slice %386 {offsets = [0, 32], sizes = [8, 32], strides = [1, 1]} : vector<8x96xf32> to vector<8x32xf32>
    %400 = vector.extract_strided_slice %388 {offsets = [0, 32], sizes = [8, 32], strides = [1, 1]} : vector<8x96xf32> to vector<8x32xf32>
    %401 = arith.addf %399, %400 : vector<8x32xf32>
    %cst_117 = arith.constant 5.000000e-01 : f32
    %402 = vector.broadcast %cst_117 : f32 to vector<8x32xf32>
    %403 = arith.mulf %402, %401 : vector<8x32xf32>
    %404 = math.tanh %403 : vector<8x32xf32>
    %cst_118 = arith.constant 1.000000e+00 : f32
    %405 = vector.broadcast %cst_118 : f32 to vector<8x32xf32>
    %406 = arith.addf %404, %405 : vector<8x32xf32>
    %cst_119 = arith.constant 5.000000e-01 : f32
    %407 = vector.broadcast %cst_119 : f32 to vector<8x32xf32>
    %408 = arith.mulf %407, %406 : vector<8x32xf32>
    %409 = vector.extract_strided_slice %386 {offsets = [0, 64], sizes = [8, 32], strides = [1, 1]} : vector<8x96xf32> to vector<8x32xf32>
    %410 = vector.extract_strided_slice %388 {offsets = [0, 64], sizes = [8, 32], strides = [1, 1]} : vector<8x96xf32> to vector<8x32xf32>
    %411 = arith.mulf %398, %410 : vector<8x32xf32>
    %412 = arith.addf %409, %411 : vector<8x32xf32>
    %413 = math.tanh %412 : vector<8x32xf32>
    %cst_120 = arith.constant 1.000000e+00 : f32
    %414 = vector.broadcast %cst_120 : f32 to vector<8x32xf32>
    %415 = arith.subf %414, %408 : vector<8x32xf32>
    %416 = arith.mulf %415, %413 : vector<8x32xf32>
    %417 = arith.mulf %408, %348 : vector<8x32xf32>
    %418 = arith.addf %416, %417 : vector<8x32xf32>
    %cst_121 = arith.constant dense<0.000000e+00> : vector<8x96xf32>
    %419 = tpu.matmul %418, %12, %cst_121 {dimension_numbers = #tpu.dot_dimension_numbers<[1], [0], [0], [1], [0, 0, 1, 1], [], []>} : vector<8x32xf32>, vector<32x96xf32>, vector<8x96xf32> -> vector<8x96xf32>
    %420 = arith.addf %419, %22 : vector<8x96xf32>
    %cst_122 = arith.constant dense<0.000000e+00> : vector<8x96xf32>
    %421 = tpu.matmul %382, %13, %cst_122 {dimension_numbers = #tpu.dot_dimension_numbers<[1], [0], [0], [1], [0, 0, 1, 1], [], []>} : vector<8x32xf32>, vector<32x96xf32>, vector<8x96xf32> -> vector<8x96xf32>
    %422 = arith.addf %421, %25 : vector<8x96xf32>
    %423 = vector.extract_strided_slice %420 {offsets = [0, 0], sizes = [8, 32], strides = [1, 1]} : vector<8x96xf32> to vector<8x32xf32>
    %424 = vector.extract_strided_slice %422 {offsets = [0, 0], sizes = [8, 32], strides = [1, 1]} : vector<8x96xf32> to vector<8x32xf32>
    %425 = arith.addf %423, %424 : vector<8x32xf32>
    %cst_123 = arith.constant 5.000000e-01 : f32
    %426 = vector.broadcast %cst_123 : f32 to vector<8x32xf32>
    %427 = arith.mulf %426, %425 : vector<8x32xf32>
    %428 = math.tanh %427 : vector<8x32xf32>
    %cst_124 = arith.constant 1.000000e+00 : f32
    %429 = vector.broadcast %cst_124 : f32 to vector<8x32xf32>
    %430 = arith.addf %428, %429 : vector<8x32xf32>
    %cst_125 = arith.constant 5.000000e-01 : f32
    %431 = vector.broadcast %cst_125 : f32 to vector<8x32xf32>
    %432 = arith.mulf %431, %430 : vector<8x32xf32>
    %433 = vector.extract_strided_slice %420 {offsets = [0, 32], sizes = [8, 32], strides = [1, 1]} : vector<8x96xf32> to vector<8x32xf32>
    %434 = vector.extract_strided_slice %422 {offsets = [0, 32], sizes = [8, 32], strides = [1, 1]} : vector<8x96xf32> to vector<8x32xf32>
    %435 = arith.addf %433, %434 : vector<8x32xf32>
    %cst_126 = arith.constant 5.000000e-01 : f32
    %436 = vector.broadcast %cst_126 : f32 to vector<8x32xf32>
    %437 = arith.mulf %436, %435 : vector<8x32xf32>
    %438 = math.tanh %437 : vector<8x32xf32>
    %cst_127 = arith.constant 1.000000e+00 : f32
    %439 = vector.broadcast %cst_127 : f32 to vector<8x32xf32>
    %440 = arith.addf %438, %439 : vector<8x32xf32>
    %cst_128 = arith.constant 5.000000e-01 : f32
    %441 = vector.broadcast %cst_128 : f32 to vector<8x32xf32>
    %442 = arith.mulf %441, %440 : vector<8x32xf32>
    %443 = vector.extract_strided_slice %420 {offsets = [0, 64], sizes = [8, 32], strides = [1, 1]} : vector<8x96xf32> to vector<8x32xf32>
    %444 = vector.extract_strided_slice %422 {offsets = [0, 64], sizes = [8, 32], strides = [1, 1]} : vector<8x96xf32> to vector<8x32xf32>
    %445 = arith.mulf %432, %444 : vector<8x32xf32>
    %446 = arith.addf %443, %445 : vector<8x32xf32>
    %447 = math.tanh %446 : vector<8x32xf32>
    %cst_129 = arith.constant 1.000000e+00 : f32
    %448 = vector.broadcast %cst_129 : f32 to vector<8x32xf32>
    %449 = arith.subf %448, %442 : vector<8x32xf32>
    %450 = arith.mulf %449, %447 : vector<8x32xf32>
    %451 = arith.mulf %442, %382 : vector<8x32xf32>
    %452 = arith.addf %450, %451 : vector<8x32xf32>
    %cst_130 = arith.constant dense<0.000000e+00> : vector<8x128xf32>
    %453 = tpu.matmul %452, %14, %cst_130 {dimension_numbers = #tpu.dot_dimension_numbers<[1], [0], [0], [1], [0, 0, 1, 1], [], []>} : vector<8x32xf32>, vector<32x128xf32>, vector<8x128xf32> -> vector<8x128xf32>
    %454 = arith.addf %453, %28 : vector<8x128xf32>
    %c40 = arith.constant 40 : index
    %c0_131 = arith.constant 0 : index
    %455 = vector.load %arg7[%c40, %c0_131] : memref<64x128xf32, #tpu.memory_space<vmem>>, vector<8x128xf32>
    tpu.vector_store %arg7[%c40, %c0_131], %454 {strides = array<i32>} : memref<64x128xf32, #tpu.memory_space<vmem>>, vector<8x128xf32>,
    %456 = vector.extract_strided_slice %31 {offsets = [48, 0], sizes = [8, 96], strides = [1, 1]} : vector<64x96xf32> to vector<8x96xf32>
    %cst_132 = arith.constant dense<0.000000e+00> : vector<8x96xf32>
    %457 = tpu.matmul %418, %10, %cst_132 {dimension_numbers = #tpu.dot_dimension_numbers<[1], [0], [0], [1], [0, 0, 1, 1], [], []>} : vector<8x32xf32>, vector<32x96xf32>, vector<8x96xf32> -> vector<8x96xf32>
    %458 = arith.addf %457, %19 : vector<8x96xf32>
    %459 = vector.extract_strided_slice %456 {offsets = [0, 0], sizes = [8, 32], strides = [1, 1]} : vector<8x96xf32> to vector<8x32xf32>
    %460 = vector.extract_strided_slice %458 {offsets = [0, 0], sizes = [8, 32], strides = [1, 1]} : vector<8x96xf32> to vector<8x32xf32>
    %461 = arith.addf %459, %460 : vector<8x32xf32>
    %cst_133 = arith.constant 5.000000e-01 : f32
    %462 = vector.broadcast %cst_133 : f32 to vector<8x32xf32>
    %463 = arith.mulf %462, %461 : vector<8x32xf32>
    %464 = math.tanh %463 : vector<8x32xf32>
    %cst_134 = arith.constant 1.000000e+00 : f32
    %465 = vector.broadcast %cst_134 : f32 to vector<8x32xf32>
    %466 = arith.addf %464, %465 : vector<8x32xf32>
    %cst_135 = arith.constant 5.000000e-01 : f32
    %467 = vector.broadcast %cst_135 : f32 to vector<8x32xf32>
    %468 = arith.mulf %467, %466 : vector<8x32xf32>
    %469 = vector.extract_strided_slice %456 {offsets = [0, 32], sizes = [8, 32], strides = [1, 1]} : vector<8x96xf32> to vector<8x32xf32>
    %470 = vector.extract_strided_slice %458 {offsets = [0, 32], sizes = [8, 32], strides = [1, 1]} : vector<8x96xf32> to vector<8x32xf32>
    %471 = arith.addf %469, %470 : vector<8x32xf32>
    %cst_136 = arith.constant 5.000000e-01 : f32
    %472 = vector.broadcast %cst_136 : f32 to vector<8x32xf32>
    %473 = arith.mulf %472, %471 : vector<8x32xf32>
    %474 = math.tanh %473 : vector<8x32xf32>
    %cst_137 = arith.constant 1.000000e+00 : f32
    %475 = vector.broadcast %cst_137 : f32 to vector<8x32xf32>
    %476 = arith.addf %474, %475 : vector<8x32xf32>
    %cst_138 = arith.constant 5.000000e-01 : f32
    %477 = vector.broadcast %cst_138 : f32 to vector<8x32xf32>
    %478 = arith.mulf %477, %476 : vector<8x32xf32>
    %479 = vector.extract_strided_slice %456 {offsets = [0, 64], sizes = [8, 32], strides = [1, 1]} : vector<8x96xf32> to vector<8x32xf32>
    %480 = vector.extract_strided_slice %458 {offsets = [0, 64], sizes = [8, 32], strides = [1, 1]} : vector<8x96xf32> to vector<8x32xf32>
    %481 = arith.mulf %468, %480 : vector<8x32xf32>
    %482 = arith.addf %479, %481 : vector<8x32xf32>
    %483 = math.tanh %482 : vector<8x32xf32>
    %cst_139 = arith.constant 1.000000e+00 : f32
    %484 = vector.broadcast %cst_139 : f32 to vector<8x32xf32>
    %485 = arith.subf %484, %478 : vector<8x32xf32>
    %486 = arith.mulf %485, %483 : vector<8x32xf32>
    %487 = arith.mulf %478, %418 : vector<8x32xf32>
    %488 = arith.addf %486, %487 : vector<8x32xf32>
    %cst_140 = arith.constant dense<0.000000e+00> : vector<8x96xf32>
    %489 = tpu.matmul %488, %12, %cst_140 {dimension_numbers = #tpu.dot_dimension_numbers<[1], [0], [0], [1], [0, 0, 1, 1], [], []>} : vector<8x32xf32>, vector<32x96xf32>, vector<8x96xf32> -> vector<8x96xf32>
    %490 = arith.addf %489, %22 : vector<8x96xf32>
    %cst_141 = arith.constant dense<0.000000e+00> : vector<8x96xf32>
    %491 = tpu.matmul %452, %13, %cst_141 {dimension_numbers = #tpu.dot_dimension_numbers<[1], [0], [0], [1], [0, 0, 1, 1], [], []>} : vector<8x32xf32>, vector<32x96xf32>, vector<8x96xf32> -> vector<8x96xf32>
    %492 = arith.addf %491, %25 : vector<8x96xf32>
    %493 = vector.extract_strided_slice %490 {offsets = [0, 0], sizes = [8, 32], strides = [1, 1]} : vector<8x96xf32> to vector<8x32xf32>
    %494 = vector.extract_strided_slice %492 {offsets = [0, 0], sizes = [8, 32], strides = [1, 1]} : vector<8x96xf32> to vector<8x32xf32>
    %495 = arith.addf %493, %494 : vector<8x32xf32>
    %cst_142 = arith.constant 5.000000e-01 : f32
    %496 = vector.broadcast %cst_142 : f32 to vector<8x32xf32>
    %497 = arith.mulf %496, %495 : vector<8x32xf32>
    %498 = math.tanh %497 : vector<8x32xf32>
    %cst_143 = arith.constant 1.000000e+00 : f32
    %499 = vector.broadcast %cst_143 : f32 to vector<8x32xf32>
    %500 = arith.addf %498, %499 : vector<8x32xf32>
    %cst_144 = arith.constant 5.000000e-01 : f32
    %501 = vector.broadcast %cst_144 : f32 to vector<8x32xf32>
    %502 = arith.mulf %501, %500 : vector<8x32xf32>
    %503 = vector.extract_strided_slice %490 {offsets = [0, 32], sizes = [8, 32], strides = [1, 1]} : vector<8x96xf32> to vector<8x32xf32>
    %504 = vector.extract_strided_slice %492 {offsets = [0, 32], sizes = [8, 32], strides = [1, 1]} : vector<8x96xf32> to vector<8x32xf32>
    %505 = arith.addf %503, %504 : vector<8x32xf32>
    %cst_145 = arith.constant 5.000000e-01 : f32
    %506 = vector.broadcast %cst_145 : f32 to vector<8x32xf32>
    %507 = arith.mulf %506, %505 : vector<8x32xf32>
    %508 = math.tanh %507 : vector<8x32xf32>
    %cst_146 = arith.constant 1.000000e+00 : f32
    %509 = vector.broadcast %cst_146 : f32 to vector<8x32xf32>
    %510 = arith.addf %508, %509 : vector<8x32xf32>
    %cst_147 = arith.constant 5.000000e-01 : f32
    %511 = vector.broadcast %cst_147 : f32 to vector<8x32xf32>
    %512 = arith.mulf %511, %510 : vector<8x32xf32>
    %513 = vector.extract_strided_slice %490 {offsets = [0, 64], sizes = [8, 32], strides = [1, 1]} : vector<8x96xf32> to vector<8x32xf32>
    %514 = vector.extract_strided_slice %492 {offsets = [0, 64], sizes = [8, 32], strides = [1, 1]} : vector<8x96xf32> to vector<8x32xf32>
    %515 = arith.mulf %502, %514 : vector<8x32xf32>
    %516 = arith.addf %513, %515 : vector<8x32xf32>
    %517 = math.tanh %516 : vector<8x32xf32>
    %cst_148 = arith.constant 1.000000e+00 : f32
    %518 = vector.broadcast %cst_148 : f32 to vector<8x32xf32>
    %519 = arith.subf %518, %512 : vector<8x32xf32>
    %520 = arith.mulf %519, %517 : vector<8x32xf32>
    %521 = arith.mulf %512, %452 : vector<8x32xf32>
    %522 = arith.addf %520, %521 : vector<8x32xf32>
    %cst_149 = arith.constant dense<0.000000e+00> : vector<8x128xf32>
    %523 = tpu.matmul %522, %14, %cst_149 {dimension_numbers = #tpu.dot_dimension_numbers<[1], [0], [0], [1], [0, 0, 1, 1], [], []>} : vector<8x32xf32>, vector<32x128xf32>, vector<8x128xf32> -> vector<8x128xf32>
    %524 = arith.addf %523, %28 : vector<8x128xf32>
    %c48 = arith.constant 48 : index
    %c0_150 = arith.constant 0 : index
    %525 = vector.load %arg7[%c48, %c0_150] : memref<64x128xf32, #tpu.memory_space<vmem>>, vector<8x128xf32>
    tpu.vector_store %arg7[%c48, %c0_150], %524 {strides = array<i32>} : memref<64x128xf32, #tpu.memory_space<vmem>>, vector<8x128xf32>,
    %526 = vector.extract_strided_slice %31 {offsets = [56, 0], sizes = [8, 96], strides = [1, 1]} : vector<64x96xf32> to vector<8x96xf32>
    %cst_151 = arith.constant dense<0.000000e+00> : vector<8x96xf32>
    %527 = tpu.matmul %488, %10, %cst_151 {dimension_numbers = #tpu.dot_dimension_numbers<[1], [0], [0], [1], [0, 0, 1, 1], [], []>} : vector<8x32xf32>, vector<32x96xf32>, vector<8x96xf32> -> vector<8x96xf32>
    %528 = arith.addf %527, %19 : vector<8x96xf32>
    %529 = vector.extract_strided_slice %526 {offsets = [0, 0], sizes = [8, 32], strides = [1, 1]} : vector<8x96xf32> to vector<8x32xf32>
    %530 = vector.extract_strided_slice %528 {offsets = [0, 0], sizes = [8, 32], strides = [1, 1]} : vector<8x96xf32> to vector<8x32xf32>
    %531 = arith.addf %529, %530 : vector<8x32xf32>
    %cst_152 = arith.constant 5.000000e-01 : f32
    %532 = vector.broadcast %cst_152 : f32 to vector<8x32xf32>
    %533 = arith.mulf %532, %531 : vector<8x32xf32>
    %534 = math.tanh %533 : vector<8x32xf32>
    %cst_153 = arith.constant 1.000000e+00 : f32
    %535 = vector.broadcast %cst_153 : f32 to vector<8x32xf32>
    %536 = arith.addf %534, %535 : vector<8x32xf32>
    %cst_154 = arith.constant 5.000000e-01 : f32
    %537 = vector.broadcast %cst_154 : f32 to vector<8x32xf32>
    %538 = arith.mulf %537, %536 : vector<8x32xf32>
    %539 = vector.extract_strided_slice %526 {offsets = [0, 32], sizes = [8, 32], strides = [1, 1]} : vector<8x96xf32> to vector<8x32xf32>
    %540 = vector.extract_strided_slice %528 {offsets = [0, 32], sizes = [8, 32], strides = [1, 1]} : vector<8x96xf32> to vector<8x32xf32>
    %541 = arith.addf %539, %540 : vector<8x32xf32>
    %cst_155 = arith.constant 5.000000e-01 : f32
    %542 = vector.broadcast %cst_155 : f32 to vector<8x32xf32>
    %543 = arith.mulf %542, %541 : vector<8x32xf32>
    %544 = math.tanh %543 : vector<8x32xf32>
    %cst_156 = arith.constant 1.000000e+00 : f32
    %545 = vector.broadcast %cst_156 : f32 to vector<8x32xf32>
    %546 = arith.addf %544, %545 : vector<8x32xf32>
    %cst_157 = arith.constant 5.000000e-01 : f32
    %547 = vector.broadcast %cst_157 : f32 to vector<8x32xf32>
    %548 = arith.mulf %547, %546 : vector<8x32xf32>
    %549 = vector.extract_strided_slice %526 {offsets = [0, 64], sizes = [8, 32], strides = [1, 1]} : vector<8x96xf32> to vector<8x32xf32>
    %550 = vector.extract_strided_slice %528 {offsets = [0, 64], sizes = [8, 32], strides = [1, 1]} : vector<8x96xf32> to vector<8x32xf32>
    %551 = arith.mulf %538, %550 : vector<8x32xf32>
    %552 = arith.addf %549, %551 : vector<8x32xf32>
    %553 = math.tanh %552 : vector<8x32xf32>
    %cst_158 = arith.constant 1.000000e+00 : f32
    %554 = vector.broadcast %cst_158 : f32 to vector<8x32xf32>
    %555 = arith.subf %554, %548 : vector<8x32xf32>
    %556 = arith.mulf %555, %553 : vector<8x32xf32>
    %557 = arith.mulf %548, %488 : vector<8x32xf32>
    %558 = arith.addf %556, %557 : vector<8x32xf32>
    %cst_159 = arith.constant dense<0.000000e+00> : vector<8x96xf32>
    %559 = tpu.matmul %558, %12, %cst_159 {dimension_numbers = #tpu.dot_dimension_numbers<[1], [0], [0], [1], [0, 0, 1, 1], [], []>} : vector<8x32xf32>, vector<32x96xf32>, vector<8x96xf32> -> vector<8x96xf32>
    %560 = arith.addf %559, %22 : vector<8x96xf32>
    %cst_160 = arith.constant dense<0.000000e+00> : vector<8x96xf32>
    %561 = tpu.matmul %522, %13, %cst_160 {dimension_numbers = #tpu.dot_dimension_numbers<[1], [0], [0], [1], [0, 0, 1, 1], [], []>} : vector<8x32xf32>, vector<32x96xf32>, vector<8x96xf32> -> vector<8x96xf32>
    %562 = arith.addf %561, %25 : vector<8x96xf32>
    %563 = vector.extract_strided_slice %560 {offsets = [0, 0], sizes = [8, 32], strides = [1, 1]} : vector<8x96xf32> to vector<8x32xf32>
    %564 = vector.extract_strided_slice %562 {offsets = [0, 0], sizes = [8, 32], strides = [1, 1]} : vector<8x96xf32> to vector<8x32xf32>
    %565 = arith.addf %563, %564 : vector<8x32xf32>
    %cst_161 = arith.constant 5.000000e-01 : f32
    %566 = vector.broadcast %cst_161 : f32 to vector<8x32xf32>
    %567 = arith.mulf %566, %565 : vector<8x32xf32>
    %568 = math.tanh %567 : vector<8x32xf32>
    %cst_162 = arith.constant 1.000000e+00 : f32
    %569 = vector.broadcast %cst_162 : f32 to vector<8x32xf32>
    %570 = arith.addf %568, %569 : vector<8x32xf32>
    %cst_163 = arith.constant 5.000000e-01 : f32
    %571 = vector.broadcast %cst_163 : f32 to vector<8x32xf32>
    %572 = arith.mulf %571, %570 : vector<8x32xf32>
    %573 = vector.extract_strided_slice %560 {offsets = [0, 32], sizes = [8, 32], strides = [1, 1]} : vector<8x96xf32> to vector<8x32xf32>
    %574 = vector.extract_strided_slice %562 {offsets = [0, 32], sizes = [8, 32], strides = [1, 1]} : vector<8x96xf32> to vector<8x32xf32>
    %575 = arith.addf %573, %574 : vector<8x32xf32>
    %cst_164 = arith.constant 5.000000e-01 : f32
    %576 = vector.broadcast %cst_164 : f32 to vector<8x32xf32>
    %577 = arith.mulf %576, %575 : vector<8x32xf32>
    %578 = math.tanh %577 : vector<8x32xf32>
    %cst_165 = arith.constant 1.000000e+00 : f32
    %579 = vector.broadcast %cst_165 : f32 to vector<8x32xf32>
    %580 = arith.addf %578, %579 : vector<8x32xf32>
    %cst_166 = arith.constant 5.000000e-01 : f32
    %581 = vector.broadcast %cst_166 : f32 to vector<8x32xf32>
    %582 = arith.mulf %581, %580 : vector<8x32xf32>
    %583 = vector.extract_strided_slice %560 {offsets = [0, 64], sizes = [8, 32], strides = [1, 1]} : vector<8x96xf32> to vector<8x32xf32>
    %584 = vector.extract_strided_slice %562 {offsets = [0, 64], sizes = [8, 32], strides = [1, 1]} : vector<8x96xf32> to vector<8x32xf32>
    %585 = arith.mulf %572, %584 : vector<8x32xf32>
    %586 = arith.addf %583, %585 : vector<8x32xf32>
    %587 = math.tanh %586 : vector<8x32xf32>
    %cst_167 = arith.constant 1.000000e+00 : f32
    %588 = vector.broadcast %cst_167 : f32 to vector<8x32xf32>
    %589 = arith.subf %588, %582 : vector<8x32xf32>
    %590 = arith.mulf %589, %587 : vector<8x32xf32>
    %591 = arith.mulf %582, %522 : vector<8x32xf32>
    %592 = arith.addf %590, %591 : vector<8x32xf32>
    %cst_168 = arith.constant dense<0.000000e+00> : vector<8x128xf32>
    %593 = tpu.matmul %592, %14, %cst_168 {dimension_numbers = #tpu.dot_dimension_numbers<[1], [0], [0], [1], [0, 0, 1, 1], [], []>} : vector<8x32xf32>, vector<32x128xf32>, vector<8x128xf32> -> vector<8x128xf32>
    %594 = arith.addf %593, %28 : vector<8x128xf32>
    %c56 = arith.constant 56 : index
    %c0_169 = arith.constant 0 : index
    %595 = vector.load %arg7[%c56, %c0_169] : memref<64x128xf32, #tpu.memory_space<vmem>>, vector<8x128xf32>
    tpu.vector_store %arg7[%c56, %c0_169], %594 {strides = array<i32>} : memref<64x128xf32, #tpu.memory_space<vmem>>, vector<8x128xf32>,
    %c0_170 = arith.constant 0 : index
    %c0_171 = arith.constant 0 : index
    %c0_172 = arith.constant 0 : index
    %596 = vector.load %arg8[%c0_170, %c0_171, %c0_172] : memref<2x8x32xf32, #tpu.memory_space<vmem>>, vector<1x8x32xf32>
    %597 = vector.shape_cast %596 : vector<1x8x32xf32> to vector<8x32xf32>
    %598 = vector.shape_cast %558 : vector<8x32xf32> to vector<1x8x32xf32>
    tpu.vector_store %arg8[%c0_170, %c0_171, %c0_172], %598 {strides = array<i32>} : memref<2x8x32xf32, #tpu.memory_space<vmem>>, vector<1x8x32xf32>,
    %c1_173 = arith.constant 1 : index
    %c0_174 = arith.constant 0 : index
    %c0_175 = arith.constant 0 : index
    %599 = vector.load %arg8[%c1_173, %c0_174, %c0_175] : memref<2x8x32xf32, #tpu.memory_space<vmem>>, vector<1x8x32xf32>
    %600 = vector.shape_cast %599 : vector<1x8x32xf32> to vector<8x32xf32>
    %601 = vector.shape_cast %592 : vector<8x32xf32> to vector<1x8x32xf32>
    tpu.vector_store %arg8[%c1_173, %c0_174, %c0_175], %601 {strides = array<i32>} : memref<2x8x32xf32, #tpu.memory_space<vmem>>, vector<1x8x32xf32>,
    return
  }
}

</mosaic_0001>

<llo_original>
// kernel: lstmlm_forward.1
$region0: #{lstmlm_forward.1}
  #allocation0 [shape = 'u32[]', space=smem, size = 0x4, offset = 0x4, fixed_abs, tag = 'smem constant byte address 0x4 - core index']
  #allocation1 [shape = 'u32[72,128]{1,0:T(1,128)}', space=vmem, size = 0x9000, scoped, tag = 'internal scratch']
  %s0 = inlined_call_operand.vmem [shape: s32[64,1], index: 0, kind: input, shape index: {}]
  %s1 = inlined_call_operand.hbm [shape: f32[64,32], index: 1, kind: input, shape index: {}]
  %s2 = inlined_call_operand.hbm [shape: f32[64,96], index: 2, kind: input, shape index: {}]
  %s3 = inlined_call_operand.vmem [shape: f32[64,96], index: 3, kind: input, shape index: {}]
  %s4 = inlined_call_operand.vmem [shape: f32[8,128], index: 4, kind: input, shape index: {}]
  %s5 = inlined_call_operand.vmem [shape: f32[32,128], index: 5, kind: input, shape index: {}]
  %s6 = inlined_call_operand.vmem [shape: f32[2,8,32], index: 6, kind: input, shape index: {}, may-alias: {6,8}]
  %s7 = inlined_call_operand.vmem [shape: f32[64,128], index: 7, kind: output, shape index: {0}]
  %s8 = inlined_call_operand.vmem [shape: f32[2,8,32], index: 8, kind: output, shape index: {1}, may-alias: {6,8}]
  %9 = xla_tuple %s7, %s8
  %s10 = sld [smem:[#allocation0]]
  $region54: #{lstmlm_forward.1} parent=0
    _
  %s12 = ssub.s32 1, %s10
  %s13 = scalar_select 0, %s12, %s10
  $region1: #{lstmlm_forward.1} parent=0
    #allocation2 [shape = 'u8[32768]{0}', space=vmem, size = 0x8000, scoped, tag = 'input window, operand 1, single buffered']
    #allocation3 [shape = 's32[1]{0}', space=sflag, size = 0x4, scoped, tag = 'scoped memory for lstmlm_forward.1']
    #allocation4 [shape = 'u8[32768]{0}', space=vmem, size = 0x8000, scoped, tag = 'input window, operand 2, single buffered']
    #allocation5 [shape = 's32[1]{0}', space=sflag, size = 0x4, scoped, tag = 'scoped memory for lstmlm_forward.1']
    %14 = vsyncpa [#allocation3], 0
    %15 = vsyncpa [#allocation5], 0
    // Predicated region
    $region2: #{lstmlm_forward.1} parent=1 // pred_check
      _
    $region3: #{lstmlm_forward.1} parent=1 // pred_check_branch
      %17 = sbr.rel (0) target = $region5
    $region4: #{lstmlm_forward.1} parent=1 // pred_region
      _
    $region5: #{lstmlm_forward.1} parent=1 // pred_fallthru
      _
    // Predicated region
    $region6: #{lstmlm_forward.1} parent=1 // pred_check
      _
    $region7: #{lstmlm_forward.1} parent=1 // pred_check_branch
      %19 = sbr.rel (0) target = $region9
    $region8: #{lstmlm_forward.1} parent=1 // pred_region
      %21 = vsyncadd [#allocation3], 0
      %s22 = sshll.u32 %s1, 4
      %s23 = int_to_ptr.hbm [resolvable:$true] %s22
      %s24 = sshll.u32 [#allocation2], 4
      %s25 = int_to_ptr.vmem [resolvable:$true] %s24
      %30 = dma.hbm_to_vmem [thread:$0]  %s23, 1024, %s25, [#allocation3], 128, 128, 8
    $region9: #{lstmlm_forward.1} parent=1 // pred_fallthru
      _
    // Predicated region
    $region10: #{lstmlm_forward.1} parent=1 // pred_check
      _
    $region11: #{lstmlm_forward.1} parent=1 // pred_check_branch
      %32 = sbr.rel (0) target = $region13
    $region12: #{lstmlm_forward.1} parent=1 // pred_region
      %34 = vsyncadd [#allocation5], 0
      %s35 = sshll.u32 %s2, 4
      %s36 = int_to_ptr.hbm [resolvable:$true] %s35
      %s37 = sshll.u32 [#allocation4], 4
      %s38 = int_to_ptr.vmem [resolvable:$true] %s37
      %43 = dma.hbm_to_vmem [thread:$0]  %s36, 1024, %s38, [#allocation5], 128, 128, 8
    $region13: #{lstmlm_forward.1} parent=1 // pred_fallthru
      _
    // Predicated region
    $region14: #{lstmlm_forward.1} parent=1 // pred_check
      _
    $region15: #{lstmlm_forward.1} parent=1 // pred_check_branch
      %45 = sbr.rel (0) target = $region17
    $region16: #{lstmlm_forward.1} parent=1 // pred_region
      _
    $region17: #{lstmlm_forward.1} parent=1 // pred_fallthru
      _
    // Predicated region
    $region18: #{lstmlm_forward.1} parent=1 // pred_check
      _
    $region19: #{lstmlm_forward.1} parent=1 // pred_check_branch
      %47 = sbr.rel (0) target = $region21
    $region20: #{lstmlm_forward.1} parent=1 // pred_region
      _
    $region21: #{lstmlm_forward.1} parent=1 // pred_fallthru
      _
    // Predicated region
    $region22: #{lstmlm_forward.1} parent=1 // pred_check
      _
    $region23: #{lstmlm_forward.1} parent=1 // pred_check_branch
      %49 = sbr.rel (0) target = $region25
    $region24: #{lstmlm_forward.1} parent=1 // pred_region
      _
    $region25: #{lstmlm_forward.1} parent=1 // pred_fallthru
      _
    // Predicated region
    $region26: #{lstmlm_forward.1} parent=1 // pred_check
      _
    $region27: #{lstmlm_forward.1} parent=1 // pred_check_branch
      %51 = sbr.rel (0) target = $region29
    $region28: #{lstmlm_forward.1} parent=1 // pred_region
      _
    $region29: #{lstmlm_forward.1} parent=1 // pred_fallthru
      _
    // Predicated region
    $region30: #{lstmlm_forward.1} parent=1 // pred_check
      _
    $region31: #{lstmlm_forward.1} parent=1 // pred_check_branch
      %53 = sbr.rel (0) target = $region33
    $region32: #{lstmlm_forward.1} parent=1 // pred_region
      %55 = dma.done [#allocation3], 1024
    $region33: #{lstmlm_forward.1} parent=1 // pred_fallthru
      _
    // Predicated region
    $region34: #{lstmlm_forward.1} parent=1 // pred_check
      _
    $region35: #{lstmlm_forward.1} parent=1 // pred_check_branch
      %57 = sbr.rel (0) target = $region37
    $region36: #{lstmlm_forward.1} parent=1 // pred_region
      %59 = dma.done [#allocation5], 1024
    $region37: #{lstmlm_forward.1} parent=1 // pred_fallthru
      _
    %v60 = vld [vmem:[%s0] sm:$0xff]
    %v61 = vld [vmem:[%s0 + $0x8] sm:$0xff]
    %v62 = vld [vmem:[%s0 + $0x10] sm:$0xff]
    %v63 = vld [vmem:[%s0 + $0x18] sm:$0xff]
    %v64 = vld [vmem:[%s0 + $0x20] sm:$0xff]
    %v65 = vld [vmem:[%s0 + $0x28] sm:$0xff]
    %v66 = vld [vmem:[%s0 + $0x30] sm:$0xff]
    %v67 = vld [vmem:[%s0 + $0x38] sm:$0xff]
    %v68 = vlaneseq
    %v69 = vand.u32 %v68, 127
    %70 = vset.pattern.permute.xlu0 0
    %71 = vperm.xlu0 %70, %v60
    %v72 = vpop.permute.xlu0 %71
    %73 = vset.pattern.permute.xlu0 0
    %74 = vperm.xlu0 %73, %v61
    %v75 = vpop.permute.xlu0 %74
    %76 = vset.pattern.permute.xlu0 0
    %77 = vperm.xlu0 %76, %v62
    %v78 = vpop.permute.xlu0 %77
    %79 = vset.pattern.permute.xlu0 0
    %80 = vperm.xlu0 %79, %v63
    %v81 = vpop.permute.xlu0 %80
    %82 = vset.pattern.permute.xlu0 0
    %83 = vperm.xlu0 %82, %v64
    %v84 = vpop.permute.xlu0 %83
    %85 = vset.pattern.permute.xlu0 0
    %86 = vperm.xlu0 %85, %v65
    %v87 = vpop.permute.xlu0 %86
    %88 = vset.pattern.permute.xlu0 0
    %89 = vperm.xlu0 %88, %v66
    %v90 = vpop.permute.xlu0 %89
    %91 = vset.pattern.permute.xlu0 0
    %92 = vperm.xlu0 %91, %v67
    %v93 = vpop.permute.xlu0 %92
    %vm94 = vcmp.eq.s32.totalorder %v69, %v72
    %vm95 = vcmp.eq.s32.totalorder %v69, %v75
    %vm96 = vcmp.eq.s32.totalorder %v69, %v78
    %vm97 = vcmp.eq.s32.totalorder %v69, %v81
    %vm98 = vcmp.eq.s32.totalorder %v69, %v84
    %vm99 = vcmp.eq.s32.totalorder %v69, %v87
    %vm100 = vcmp.eq.s32.totalorder %v69, %v90
    %vm101 = vcmp.eq.s32.totalorder %v69, %v93
    %v102 = vsel %vm94, 1, 0
    %v103 = vsel %vm95, 1, 0
    %v104 = vsel %vm96, 1, 0
    %v105 = vsel %vm97, 1, 0
    %v106 = vsel %vm98, 1, 0
    %v107 = vsel %vm99, 1, 0
    %v108 = vsel %vm100, 1, 0
    %v109 = vsel %vm101, 1, 0
    %v110 = vcvt.s32.f32 %v102
    %v111 = vcvt.s32.f32 %v103
    %v112 = vcvt.s32.f32 %v104
    %v113 = vcvt.s32.f32 %v105
    %v114 = vcvt.s32.f32 %v106
    %v115 = vcvt.s32.f32 %v107
    %v116 = vcvt.s32.f32 %v108
    %v117 = vcvt.s32.f32 %v109
    %v118 = vld [vmem:[#allocation2] sm:$0xff]
    %v119 = vld [vmem:[#allocation2 + $0x8] sm:$0xff]
    %v120 = vld [vmem:[#allocation2 + $0x10] sm:$0xff]
    %v121 = vld [vmem:[#allocation2 + $0x18] sm:$0xff]
    %v122 = vld [vmem:[#allocation2 + $0x20] sm:$0xff]
    %v123 = vld [vmem:[#allocation2 + $0x28] sm:$0xff]
    %v124 = vld [vmem:[#allocation2 + $0x30] sm:$0xff]
    %v125 = vld [vmem:[#allocation2 + $0x38] sm:$0xff]
    %vm126 = vcmask 523264
    %v128 = vsel %vm126, %v110, 0
    %v131 = vsel %vm126, %v111, 0
    %v134 = vsel %vm126, %v112, 0
    %v137 = vsel %vm126, %v113, 0
    %v140 = vsel %vm126, %v114, 0
    %v143 = vsel %vm126, %v115, 0
    %v146 = vsel %vm126, %v116, 0
    %v149 = vsel %vm126, %v117, 0
    %151 = vmatpush.msra.mxu0 0.0
    %152 = vmatpush.msra.mxu0 0.0
    %153 = vmatpush.msra.mxu0 0.0
    %154 = vmatpush.msra.mxu0 0.0
    %155 = vmatpush.msra.mxu0 0.0
    %156 = vmatpush.msra.mxu0 0.0
    %157 = vmatpush.msra.mxu0 0.0
    %158 = vmatpush.msra.mxu0 0.0
    %159 = vmatpush.msra.mxu0 %v125
    %160 = vmatpush.msra.mxu0 %v124
    %161 = vmatpush.msra.mxu0 %v123
    %162 = vmatpush.msra.mxu0 %v122
    %163 = vmatpush.msra.mxu0 %v121
    %164 = vmatpush.msra.mxu0 %v120
    %165 = vmatpush.msra.mxu0 %v119
    %166 = vmatpush.msra.mxu0 %v118
    %167 = vmatmul.f32.gmra.mxu0 %v128
    %v168 = vpop.f32.mrf.mxu0
    %v169 = vadd.f32 0.0, %v168
    %170 = vmatmul.f32.gmra.mxu0 %v131
    %v171 = vpop.f32.mrf.mxu0
    %v172 = vadd.f32 0.0, %v171
    %173 = vmatmul.f32.gmra.mxu0 %v134
    %v174 = vpop.f32.mrf.mxu0
    %v175 = vadd.f32 0.0, %v174
    %176 = vmatmul.f32.gmra.mxu0 %v137
    %v177 = vpop.f32.mrf.mxu0
    %v178 = vadd.f32 0.0, %v177
    %179 = vmatmul.f32.gmra.mxu0 %v140
    %v180 = vpop.f32.mrf.mxu0
    %v181 = vadd.f32 0.0, %v180
    %182 = vmatmul.f32.gmra.mxu0 %v143
    %v183 = vpop.f32.mrf.mxu0
    %v184 = vadd.f32 0.0, %v183
    %185 = vmatmul.f32.gmra.mxu0 %v146
    %v186 = vpop.f32.mrf.mxu0
    %v187 = vadd.f32 0.0, %v186
    %188 = vmatmul.f32.gmra.mxu0 %v149
    %v189 = vpop.f32.mrf.mxu0
    %v190 = vadd.f32 0.0, %v189
    %191 = vdwg.mxu0
    %v192 = vld [vmem:[#allocation4] sm:$0xff]
    %v193 = vld [vmem:[#allocation4 + $0x8] sm:$0xff]
    %v194 = vld [vmem:[#allocation4 + $0x10] sm:$0xff]
    %v195 = vld [vmem:[#allocation4 + $0x18] sm:$0xff]
    %v196 = vld [vmem:[#allocation4 + $0x20] sm:$0xff]
    %v197 = vld [vmem:[#allocation4 + $0x28] sm:$0xff]
    %v198 = vld [vmem:[#allocation4 + $0x30] sm:$0xff]
    %v199 = vld [vmem:[#allocation4 + $0x38] sm:$0xff]
    %v200 = vld [vmem:[%s3] sm:$0xff]
    %v201 = vld [vmem:[%s3 + $0x8] sm:$0xff]
    %v202 = vld [vmem:[%s3 + $0x10] sm:$0xff]
    %v203 = vld [vmem:[%s3 + $0x18] sm:$0xff]
    %v204 = vld [vmem:[%s3 + $0x20] sm:$0xff]
    %v205 = vld [vmem:[%s3 + $0x28] sm:$0xff]
    %v206 = vld [vmem:[%s3 + $0x30] sm:$0xff]
    %v207 = vld [vmem:[%s3 + $0x38] sm:$0xff]
    %v208 = vld [vmem:[%s5] sm:$0xff]
    %v209 = vld [vmem:[%s5 + $0x8] sm:$0xff]
    %v210 = vld [vmem:[%s5 + $0x10] sm:$0xff]
    %v211 = vld [vmem:[%s5 + $0x18] sm:$0xff]
    %v212 = vld [vmem:[%s4] sm:$0xff]
    %v213 = vperm.slane %v212, 1
    %v214 = vperm.slane %v212, 2
    %v215 = vperm.slane %v212, 3
    %v216 = vperm.slane %v212, 4
    %v217 = vperm.slane %v212, 0
    %vm218 = vcmask 261120
    %v220 = vsel %vm218, %v169, 0
    %v223 = vsel %vm218, %v172, 0
    %v226 = vsel %vm218, %v175, 0
    %v229 = vsel %vm218, %v178, 0
    %v232 = vsel %vm218, %v181, 0
    %v235 = vsel %vm218, %v184, 0
    %v238 = vsel %vm218, %v187, 0
    %v241 = vsel %vm218, %v190, 0
    %243 = vmatpush.msra.mxu0 0.0
    %244 = vmatpush.msra.mxu0 0.0
    %245 = vmatpush.msra.mxu0 0.0
    %246 = vmatpush.msra.mxu0 0.0
    %247 = vmatpush.msra.mxu0 0.0
    %248 = vmatpush.msra.mxu0 0.0
    %249 = vmatpush.msra.mxu0 0.0
    %250 = vmatpush.msra.mxu0 0.0
    %251 = vmatpush.msra.mxu0 0.0
    %252 = vmatpush.msra.mxu0 0.0
    %253 = vmatpush.msra.mxu0 0.0
    %254 = vmatpush.msra.mxu0 0.0
    %255 = vmatpush.msra.mxu0 %v195
    %256 = vmatpush.msra.mxu0 %v194
    %257 = vmatpush.msra.mxu0 %v193
    %258 = vmatpush.msra.mxu0 %v192
    %259 = vmatmul.f32.gmra.mxu0 %v220
    %v260 = vpop.f32.mrf.mxu0
    %v261 = vadd.f32 %v217, %v260
    %262 = vmatmul.f32.gmra.mxu0 %v223
    %v263 = vpop.f32.mrf.mxu0
    %v264 = vadd.f32 %v217, %v263
    %265 = vmatmul.f32.gmra.mxu0 %v226
    %v266 = vpop.f32.mrf.mxu0
    %v267 = vadd.f32 %v217, %v266
    %268 = vmatmul.f32.gmra.mxu0 %v229
    %v269 = vpop.f32.mrf.mxu0
    %v270 = vadd.f32 %v217, %v269
    %271 = vmatmul.f32.gmra.mxu0 %v232
    %v272 = vpop.f32.mrf.mxu0
    %v273 = vadd.f32 %v217, %v272
    %274 = vmatmul.f32.gmra.mxu0 %v235
    %v275 = vpop.f32.mrf.mxu0
    %v276 = vadd.f32 %v217, %v275
    %277 = vmatmul.f32.gmra.mxu0 %v238
    %v278 = vpop.f32.mrf.mxu0
    %v279 = vadd.f32 %v217, %v278
    %280 = vmatmul.f32.gmra.mxu0 %v241
    %v281 = vpop.f32.mrf.mxu0
    %v282 = vadd.f32 %v217, %v281
    %283 = vdwg.mxu0
    %v284 = vld [vmem:[%s6] sm:$0xff]
    %s285 = scalar_lea.vmem %s6, 8
    %v286 = vld [vmem:[%s285] sm:$0xff]
    %v288 = vsel %vm218, %v284, 0
    %290 = vmatpush.msra.mxu0 0.0
    %291 = vmatpush.msra.mxu0 0.0
    %292 = vmatpush.msra.mxu0 0.0
    %293 = vmatpush.msra.mxu0 0.0
    %294 = vmatpush.msra.mxu0 0.0
    %295 = vmatpush.msra.mxu0 0.0
    %296 = vmatpush.msra.mxu0 0.0
    %297 = vmatpush.msra.mxu0 0.0
    %298 = vmatpush.msra.mxu0 0.0
    %299 = vmatpush.msra.mxu0 0.0
    %300 = vmatpush.msra.mxu0 0.0
    %301 = vmatpush.msra.mxu0 0.0
    %302 = vmatpush.msra.mxu0 %v199
    %303 = vmatpush.msra.mxu0 %v198
    %304 = vmatpush.msra.mxu0 %v197
    %305 = vmatpush.msra.mxu0 %v196
    %306 = vmatmul.f32.gmra.mxu0 %v288
    %v307 = vpop.f32.mrf.mxu0
    %v308 = vadd.f32 %v213, %v307
    %309 = vdwg.mxu0
    %v310 = vadd.f32 %v261, %v308
    %v311 = vmul.f32 %v310, 0.5
    %v312 = vtanh.pop %v311
    %v313 = vadd.f32 %v312, 1.0
    %v314 = vmul.f32 %v313, 0.5
    %316 = vrot.lane.b32.xlu0 %v308, 64
    %v317 = vpop.permute.xlu0 %316
    %v319 = vmul.f32 %v314, %v317
    %321 = vrot.lane.b32.xlu0 %v319, 64
    %v322 = vpop.permute.xlu0 %321
    %v324 = vadd.f32 %v261, %v322
    %v325 = vtanh.pop %v324
    %v326 = vsub.f32 1.0, %v314
    %328 = vrot.lane.b32.xlu0 %v325, 96
    %v329 = vpop.permute.xlu0 %328
    %v331 = vmul.f32 %v326, %v329
    %332 = vrot.lane.b32.xlu0 %v284, 32
    %v333 = vpop.permute.xlu0 %332
    %v335 = vmul.f32 %v314, %v333
    %v336 = vadd.f32 %v331, %v335
    %338 = vrot.lane.b32.xlu0 %v336, 96
    %v339 = vpop.permute.xlu0 %338
    %v340 = vsel %vm218, %v339, 0
    %342 = vmatpush.msra.mxu0 0.0
    %343 = vmatpush.msra.mxu0 0.0
    %344 = vmatpush.msra.mxu0 0.0
    %345 = vmatpush.msra.mxu0 0.0
    %346 = vmatpush.msra.mxu0 0.0
    %347 = vmatpush.msra.mxu0 0.0
    %348 = vmatpush.msra.mxu0 0.0
    %349 = vmatpush.msra.mxu0 0.0
    %350 = vmatpush.msra.mxu0 0.0
    %351 = vmatpush.msra.mxu0 0.0
    %352 = vmatpush.msra.mxu0 0.0
    %353 = vmatpush.msra.mxu0 0.0
    %354 = vmatpush.msra.mxu0 %v203
    %355 = vmatpush.msra.mxu0 %v202
    %356 = vmatpush.msra.mxu0 %v201
    %357 = vmatpush.msra.mxu0 %v200
    %358 = vmatmul.f32.gmra.mxu0 %v340
    %v359 = vpop.f32.mrf.mxu0
    %v360 = vadd.f32 %v214, %v359
    %361 = vdwg.mxu0
    %v363 = vsel %vm218, %v286, 0
    %365 = vmatpush.msra.mxu0 0.0
    %366 = vmatpush.msra.mxu0 0.0
    %367 = vmatpush.msra.mxu0 0.0
    %368 = vmatpush.msra.mxu0 0.0
    %369 = vmatpush.msra.mxu0 0.0
    %370 = vmatpush.msra.mxu0 0.0
    %371 = vmatpush.msra.mxu0 0.0
    %372 = vmatpush.msra.mxu0 0.0
    %373 = vmatpush.msra.mxu0 0.0
    %374 = vmatpush.msra.mxu0 0.0
    %375 = vmatpush.msra.mxu0 0.0
    %376 = vmatpush.msra.mxu0 0.0
    %377 = vmatpush.msra.mxu0 %v207
    %378 = vmatpush.msra.mxu0 %v206
    %379 = vmatpush.msra.mxu0 %v205
    %380 = vmatpush.msra.mxu0 %v204
    %381 = vmatmul.f32.gmra.mxu0 %v363
    %v382 = vpop.f32.mrf.mxu0
    %v383 = vadd.f32 %v215, %v382
    %384 = vdwg.mxu0
    %v385 = vadd.f32 %v360, %v383
    %v386 = vmul.f32 %v385, 0.5
    %v387 = vtanh.pop %v386
    %v388 = vadd.f32 %v387, 1.0
    %v389 = vmul.f32 %v388, 0.5
    %391 = vrot.lane.b32.xlu0 %v383, 64
    %v392 = vpop.permute.xlu0 %391
    %v394 = vmul.f32 %v389, %v392
    %396 = vrot.lane.b32.xlu0 %v394, 64
    %v397 = vpop.permute.xlu0 %396
    %v399 = vadd.f32 %v360, %v397
    %v400 = vtanh.pop %v399
    %v401 = vsub.f32 1.0, %v389
    %403 = vrot.lane.b32.xlu0 %v400, 96
    %v404 = vpop.permute.xlu0 %403
    %v406 = vmul.f32 %v401, %v404
    %407 = vrot.lane.b32.xlu0 %v286, 32
    %v408 = vpop.permute.xlu0 %407
    %v410 = vmul.f32 %v389, %v408
    %v411 = vadd.f32 %v406, %v410
    %413 = vrot.lane.b32.xlu0 %v411, 96
    %v414 = vpop.permute.xlu0 %413
    %v415 = vsel %vm218, %v414, 0
    %417 = vmatpush.msra.mxu0 0.0
    %418 = vmatpush.msra.mxu0 0.0
    %419 = vmatpush.msra.mxu0 0.0
    %420 = vmatpush.msra.mxu0 0.0
    %421 = vmatpush.msra.mxu0 0.0
    %422 = vmatpush.msra.mxu0 0.0
    %423 = vmatpush.msra.mxu0 0.0
    %424 = vmatpush.msra.mxu0 0.0
    %425 = vmatpush.msra.mxu0 0.0
    %426 = vmatpush.msra.mxu0 0.0
    %427 = vmatpush.msra.mxu0 0.0
    %428 = vmatpush.msra.mxu0 0.0
    %429 = vmatpush.msra.mxu0 %v211
    %430 = vmatpush.msra.mxu0 %v210
    %431 = vmatpush.msra.mxu0 %v209
    %432 = vmatpush.msra.mxu0 %v208
    %433 = vmatmul.f32.gmra.mxu0 %v415
    %v434 = vpop.f32.mrf.mxu0
    %v435 = vadd.f32 %v216, %v434
    %436 = vdwg.mxu0
    %437 = vst [vmem:[%s7] sm:$0xff] %v435
    %438 = vmatpush.msra.mxu0 0.0
    %439 = vmatpush.msra.mxu0 0.0
    %440 = vmatpush.msra.mxu0 0.0
    %441 = vmatpush.msra.mxu0 0.0
    %442 = vmatpush.msra.mxu0 0.0
    %443 = vmatpush.msra.mxu0 0.0
    %444 = vmatpush.msra.mxu0 0.0
    %445 = vmatpush.msra.mxu0 0.0
    %446 = vmatpush.msra.mxu0 0.0
    %447 = vmatpush.msra.mxu0 0.0
    %448 = vmatpush.msra.mxu0 0.0
    %449 = vmatpush.msra.mxu0 0.0
    %450 = vmatpush.msra.mxu0 %v199
    %451 = vmatpush.msra.mxu0 %v198
    %452 = vmatpush.msra.mxu0 %v197
    %453 = vmatpush.msra.mxu0 %v196
    %454 = vmatmul.f32.gmra.mxu0 %v340
    %v455 = vpop.f32.mrf.mxu0
    %v456 = vadd.f32 %v213, %v455
    %457 = vdwg.mxu0
    %v458 = vadd.f32 %v264, %v456
    %v459 = vmul.f32 %v458, 0.5
    %v460 = vtanh.pop %v459
    %v461 = vadd.f32 %v460, 1.0
    %v462 = vmul.f32 %v461, 0.5
    %464 = vrot.lane.b32.xlu0 %v456, 64
    %v465 = vpop.permute.xlu0 %464
    %v467 = vmul.f32 %v462, %v465
    %469 = vrot.lane.b32.xlu0 %v467, 64
    %v470 = vpop.permute.xlu0 %469
    %v472 = vadd.f32 %v264, %v470
    %v473 = vtanh.pop %v472
    %v474 = vsub.f32 1.0, %v462
    %476 = vrot.lane.b32.xlu0 %v473, 96
    %v477 = vpop.permute.xlu0 %476
    %v479 = vmul.f32 %v474, %v477
    %v480 = vmul.f32 %v462, %v336
    %v481 = vadd.f32 %v479, %v480
    %483 = vrot.lane.b32.xlu0 %v481, 96
    %v484 = vpop.permute.xlu0 %483
    %v485 = vsel %vm218, %v484, 0
    %487 = vmatpush.msra.mxu0 0.0
    %488 = vmatpush.msra.mxu0 0.0
    %489 = vmatpush.msra.mxu0 0.0
    %490 = vmatpush.msra.mxu0 0.0
    %491 = vmatpush.msra.mxu0 0.0
    %492 = vmatpush.msra.mxu0 0.0
    %493 = vmatpush.msra.mxu0 0.0
    %494 = vmatpush.msra.mxu0 0.0
    %495 = vmatpush.msra.mxu0 0.0
    %496 = vmatpush.msra.mxu0 0.0
    %497 = vmatpush.msra.mxu0 0.0
    %498 = vmatpush.msra.mxu0 0.0
    %499 = vmatpush.msra.mxu0 %v203
    %500 = vmatpush.msra.mxu0 %v202
    %501 = vmatpush.msra.mxu0 %v201
    %502 = vmatpush.msra.mxu0 %v200
    %503 = vmatmul.f32.gmra.mxu0 %v485
    %v504 = vpop.f32.mrf.mxu0
    %v505 = vadd.f32 %v214, %v504
    %506 = vdwg.mxu0
    %507 = vmatpush.msra.mxu0 0.0
    %508 = vmatpush.msra.mxu0 0.0
    %509 = vmatpush.msra.mxu0 0.0
    %510 = vmatpush.msra.mxu0 0.0
    %511 = vmatpush.msra.mxu0 0.0
    %512 = vmatpush.msra.mxu0 0.0
    %513 = vmatpush.msra.mxu0 0.0
    %514 = vmatpush.msra.mxu0 0.0
    %515 = vmatpush.msra.mxu0 0.0
    %516 = vmatpush.msra.mxu0 0.0
    %517 = vmatpush.msra.mxu0 0.0
    %518 = vmatpush.msra.mxu0 0.0
    %519 = vmatpush.msra.mxu0 %v207
    %520 = vmatpush.msra.mxu0 %v206
    %521 = vmatpush.msra.mxu0 %v205
    %522 = vmatpush.msra.mxu0 %v204
    %523 = vmatmul.f32.gmra.mxu0 %v415
    %v524 = vpop.f32.mrf.mxu0
    %v525 = vadd.f32 %v215, %v524
    %526 = vdwg.mxu0
    %v527 = vadd.f32 %v505, %v525
    %v528 = vmul.f32 %v527, 0.5
    %v529 = vtanh.pop %v528
    %v530 = vadd.f32 %v529, 1.0
    %v531 = vmul.f32 %v530, 0.5
    %533 = vrot.lane.b32.xlu0 %v525, 64
    %v534 = vpop.permute.xlu0 %533
    %v536 = vmul.f32 %v531, %v534
    %538 = vrot.lane.b32.xlu0 %v536, 64
    %v539 = vpop.permute.xlu0 %538
    %v541 = vadd.f32 %v505, %v539
    %v542 = vtanh.pop %v541
    %v543 = vsub.f32 1.0, %v531
    %545 = vrot.lane.b32.xlu0 %v542, 96
    %v546 = vpop.permute.xlu0 %545
    %v548 = vmul.f32 %v543, %v546
    %v549 = vmul.f32 %v531, %v411
    %v550 = vadd.f32 %v548, %v549
    %552 = vrot.lane.b32.xlu0 %v550, 96
    %v553 = vpop.permute.xlu0 %552
    %v554 = vsel %vm218, %v553, 0
    %556 = vmatpush.msra.mxu0 0.0
    %557 = vmatpush.msra.mxu0 0.0
    %558 = vmatpush.msra.mxu0 0.0
    %559 = vmatpush.msra.mxu0 0.0
    %560 = vmatpush.msra.mxu0 0.0
    %561 = vmatpush.msra.mxu0 0.0
    %562 = vmatpush.msra.mxu0 0.0
    %563 = vmatpush.msra.mxu0 0.0
    %564 = vmatpush.msra.mxu0 0.0
    %565 = vmatpush.msra.mxu0 0.0
    %566 = vmatpush.msra.mxu0 0.0
    %567 = vmatpush.msra.mxu0 0.0
    %568 = vmatpush.msra.mxu0 %v211
    %569 = vmatpush.msra.mxu0 %v210
    %570 = vmatpush.msra.mxu0 %v209
    %571 = vmatpush.msra.mxu0 %v208
    %572 = vmatmul.f32.gmra.mxu0 %v554
    %v573 = vpop.f32.mrf.mxu0
    %v574 = vadd.f32 %v216, %v573
    %575 = vdwg.mxu0
    %576 = vst [vmem:[%s7 + $0x8] sm:$0xff] %v574
    %577 = vmatpush.msra.mxu0 0.0
    %578 = vmatpush.msra.mxu0 0.0
    %579 = vmatpush.msra.mxu0 0.0
    %580 = vmatpush.msra.mxu0 0.0
    %581 = vmatpush.msra.mxu0 0.0
    %582 = vmatpush.msra.mxu0 0.0
    %583 = vmatpush.msra.mxu0 0.0
    %584 = vmatpush.msra.mxu0 0.0
    %585 = vmatpush.msra.mxu0 0.0
    %586 = vmatpush.msra.mxu0 0.0
    %587 = vmatpush.msra.mxu0 0.0
    %588 = vmatpush.msra.mxu0 0.0
    %589 = vmatpush.msra.mxu0 %v199
    %590 = vmatpush.msra.mxu0 %v198
    %591 = vmatpush.msra.mxu0 %v197
    %592 = vmatpush.msra.mxu0 %v196
    %593 = vmatmul.f32.gmra.mxu0 %v485
    %v594 = vpop.f32.mrf.mxu0
    %v595 = vadd.f32 %v213, %v594
    %596 = vdwg.mxu0
    %v597 = vadd.f32 %v267, %v595
    %v598 = vmul.f32 %v597, 0.5
    %v599 = vtanh.pop %v598
    %v600 = vadd.f32 %v599, 1.0
    %v601 = vmul.f32 %v600, 0.5
    %603 = vrot.lane.b32.xlu0 %v595, 64
    %v604 = vpop.permute.xlu0 %603
    %v606 = vmul.f32 %v601, %v604
    %608 = vrot.lane.b32.xlu0 %v606, 64
    %v609 = vpop.permute.xlu0 %608
    %v611 = vadd.f32 %v267, %v609
    %v612 = vtanh.pop %v611
    %v613 = vsub.f32 1.0, %v601
    %615 = vrot.lane.b32.xlu0 %v612, 96
    %v616 = vpop.permute.xlu0 %615
    %v618 = vmul.f32 %v613, %v616
    %v619 = vmul.f32 %v601, %v481
    %v620 = vadd.f32 %v618, %v619
    %622 = vrot.lane.b32.xlu0 %v620, 96
    %v623 = vpop.permute.xlu0 %622
    %v624 = vsel %vm218, %v623, 0
    %626 = vmatpush.msra.mxu0 0.0
    %627 = vmatpush.msra.mxu0 0.0
    %628 = vmatpush.msra.mxu0 0.0
    %629 = vmatpush.msra.mxu0 0.0
    %630 = vmatpush.msra.mxu0 0.0
    %631 = vmatpush.msra.mxu0 0.0
    %632 = vmatpush.msra.mxu0 0.0
    %633 = vmatpush.msra.mxu0 0.0
    %634 = vmatpush.msra.mxu0 0.0
    %635 = vmatpush.msra.mxu0 0.0
    %636 = vmatpush.msra.mxu0 0.0
    %637 = vmatpush.msra.mxu0 0.0
    %638 = vmatpush.msra.mxu0 %v203
    %639 = vmatpush.msra.mxu0 %v202
    %640 = vmatpush.msra.mxu0 %v201
    %641 = vmatpush.msra.mxu0 %v200
    %642 = vmatmul.f32.gmra.mxu0 %v624
    %v643 = vpop.f32.mrf.mxu0
    %v644 = vadd.f32 %v214, %v643
    %645 = vdwg.mxu0
    %646 = vmatpush.msra.mxu0 0.0
    %647 = vmatpush.msra.mxu0 0.0
    %648 = vmatpush.msra.mxu0 0.0
    %649 = vmatpush.msra.mxu0 0.0
    %650 = vmatpush.msra.mxu0 0.0
    %651 = vmatpush.msra.mxu0 0.0
    %652 = vmatpush.msra.mxu0 0.0
    %653 = vmatpush.msra.mxu0 0.0
    %654 = vmatpush.msra.mxu0 0.0
    %655 = vmatpush.msra.mxu0 0.0
    %656 = vmatpush.msra.mxu0 0.0
    %657 = vmatpush.msra.mxu0 0.0
    %658 = vmatpush.msra.mxu0 %v207
    %659 = vmatpush.msra.mxu0 %v206
    %660 = vmatpush.msra.mxu0 %v205
    %661 = vmatpush.msra.mxu0 %v204
    %662 = vmatmul.f32.gmra.mxu0 %v554
    %v663 = vpop.f32.mrf.mxu0
    %v664 = vadd.f32 %v215, %v663
    %665 = vdwg.mxu0
    %v666 = vadd.f32 %v644, %v664
    %v667 = vmul.f32 %v666, 0.5
    %v668 = vtanh.pop %v667
    %v669 = vadd.f32 %v668, 1.0
    %v670 = vmul.f32 %v669, 0.5
    %672 = vrot.lane.b32.xlu0 %v664, 64
    %v673 = vpop.permute.xlu0 %672
    %v675 = vmul.f32 %v670, %v673
    %677 = vrot.lane.b32.xlu0 %v675, 64
    %v678 = vpop.permute.xlu0 %677
    %v680 = vadd.f32 %v644, %v678
    %v681 = vtanh.pop %v680
    %v682 = vsub.f32 1.0, %v670
    %684 = vrot.lane.b32.xlu0 %v681, 96
    %v685 = vpop.permute.xlu0 %684
    %v687 = vmul.f32 %v682, %v685
    %v688 = vmul.f32 %v670, %v550
    %v689 = vadd.f32 %v687, %v688
    %691 = vrot.lane.b32.xlu0 %v689, 96
    %v692 = vpop.permute.xlu0 %691
    %v693 = vsel %vm218, %v692, 0
    %695 = vmatpush.msra.mxu0 0.0
    %696 = vmatpush.msra.mxu0 0.0
    %697 = vmatpush.msra.mxu0 0.0
    %698 = vmatpush.msra.mxu0 0.0
    %699 = vmatpush.msra.mxu0 0.0
    %700 = vmatpush.msra.mxu0 0.0
    %701 = vmatpush.msra.mxu0 0.0
    %702 = vmatpush.msra.mxu0 0.0
    %703 = vmatpush.msra.mxu0 0.0
    %704 = vmatpush.msra.mxu0 0.0
    %705 = vmatpush.msra.mxu0 0.0
    %706 = vmatpush.msra.mxu0 0.0
    %707 = vmatpush.msra.mxu0 %v211
    %708 = vmatpush.msra.mxu0 %v210
    %709 = vmatpush.msra.mxu0 %v209
    %710 = vmatpush.msra.mxu0 %v208
    %711 = vmatmul.f32.gmra.mxu0 %v693
    %v712 = vpop.f32.mrf.mxu0
    %v713 = vadd.f32 %v216, %v712
    %714 = vdwg.mxu0
    %715 = vst [vmem:[%s7 + $0x10] sm:$0xff] %v713
    %716 = vmatpush.msra.mxu0 0.0
    %717 = vmatpush.msra.mxu0 0.0
    %718 = vmatpush.msra.mxu0 0.0
    %719 = vmatpush.msra.mxu0 0.0
    %720 = vmatpush.msra.mxu0 0.0
    %721 = vmatpush.msra.mxu0 0.0
    %722 = vmatpush.msra.mxu0 0.0
    %723 = vmatpush.msra.mxu0 0.0
    %724 = vmatpush.msra.mxu0 0.0
    %725 = vmatpush.msra.mxu0 0.0
    %726 = vmatpush.msra.mxu0 0.0
    %727 = vmatpush.msra.mxu0 0.0
    %728 = vmatpush.msra.mxu0 %v199
    %729 = vmatpush.msra.mxu0 %v198
    %730 = vmatpush.msra.mxu0 %v197
    %731 = vmatpush.msra.mxu0 %v196
    %732 = vmatmul.f32.gmra.mxu0 %v624
    %v733 = vpop.f32.mrf.mxu0
    %v734 = vadd.f32 %v213, %v733
    %735 = vdwg.mxu0
    %v736 = vadd.f32 %v270, %v734
    %v737 = vmul.f32 %v736, 0.5
    %v738 = vtanh.pop %v737
    %v739 = vadd.f32 %v738, 1.0
    %v740 = vmul.f32 %v739, 0.5
    %742 = vrot.lane.b32.xlu0 %v734, 64
    %v743 = vpop.permute.xlu0 %742
    %v745 = vmul.f32 %v740, %v743
    %747 = vrot.lane.b32.xlu0 %v745, 64
    %v748 = vpop.permute.xlu0 %747
    %v750 = vadd.f32 %v270, %v748
    %v751 = vtanh.pop %v750
    %v752 = vsub.f32 1.0, %v740
    %754 = vrot.lane.b32.xlu0 %v751, 96
    %v755 = vpop.permute.xlu0 %754
    %v757 = vmul.f32 %v752, %v755
    %v758 = vmul.f32 %v740, %v620
    %v759 = vadd.f32 %v757, %v758
    %761 = vrot.lane.b32.xlu0 %v759, 96
    %v762 = vpop.permute.xlu0 %761
    %v763 = vsel %vm218, %v762, 0
    %765 = vmatpush.msra.mxu0 0.0
    %766 = vmatpush.msra.mxu0 0.0
    %767 = vmatpush.msra.mxu0 0.0
    %768 = vmatpush.msra.mxu0 0.0
    %769 = vmatpush.msra.mxu0 0.0
    %770 = vmatpush.msra.mxu0 0.0
    %771 = vmatpush.msra.mxu0 0.0
    %772 = vmatpush.msra.mxu0 0.0
    %773 = vmatpush.msra.mxu0 0.0
    %774 = vmatpush.msra.mxu0 0.0
    %775 = vmatpush.msra.mxu0 0.0
    %776 = vmatpush.msra.mxu0 0.0
    %777 = vmatpush.msra.mxu0 %v203
    %778 = vmatpush.msra.mxu0 %v202
    %779 = vmatpush.msra.mxu0 %v201
    %780 = vmatpush.msra.mxu0 %v200
    %781 = vmatmul.f32.gmra.mxu0 %v763
    %v782 = vpop.f32.mrf.mxu0
    %v783 = vadd.f32 %v214, %v782
    %784 = vdwg.mxu0
    %785 = vmatpush.msra.mxu0 0.0
    %786 = vmatpush.msra.mxu0 0.0
    %787 = vmatpush.msra.mxu0 0.0
    %788 = vmatpush.msra.mxu0 0.0
    %789 = vmatpush.msra.mxu0 0.0
    %790 = vmatpush.msra.mxu0 0.0
    %791 = vmatpush.msra.mxu0 0.0
    %792 = vmatpush.msra.mxu0 0.0
    %793 = vmatpush.msra.mxu0 0.0
    %794 = vmatpush.msra.mxu0 0.0
    %795 = vmatpush.msra.mxu0 0.0
    %796 = vmatpush.msra.mxu0 0.0
    %797 = vmatpush.msra.mxu0 %v207
    %798 = vmatpush.msra.mxu0 %v206
    %799 = vmatpush.msra.mxu0 %v205
    %800 = vmatpush.msra.mxu0 %v204
    %801 = vmatmul.f32.gmra.mxu0 %v693
    %v802 = vpop.f32.mrf.mxu0
    %v803 = vadd.f32 %v215, %v802
    %804 = vdwg.mxu0
    %v805 = vadd.f32 %v783, %v803
    %v806 = vmul.f32 %v805, 0.5
    %v807 = vtanh.pop %v806
    %v808 = vadd.f32 %v807, 1.0
    %v809 = vmul.f32 %v808, 0.5
    %811 = vrot.lane.b32.xlu0 %v803, 64
    %v812 = vpop.permute.xlu0 %811
    %v814 = vmul.f32 %v809, %v812
    %816 = vrot.lane.b32.xlu0 %v814, 64
    %v817 = vpop.permute.xlu0 %816
    %v819 = vadd.f32 %v783, %v817
    %v820 = vtanh.pop %v819
    %v821 = vsub.f32 1.0, %v809
    %823 = vrot.lane.b32.xlu0 %v820, 96
    %v824 = vpop.permute.xlu0 %823
    %v826 = vmul.f32 %v821, %v824
    %v827 = vmul.f32 %v809, %v689
    %v828 = vadd.f32 %v826, %v827
    %830 = vrot.lane.b32.xlu0 %v828, 96
    %v831 = vpop.permute.xlu0 %830
    %v832 = vsel %vm218, %v831, 0
    %834 = vmatpush.msra.mxu0 0.0
    %835 = vmatpush.msra.mxu0 0.0
    %836 = vmatpush.msra.mxu0 0.0
    %837 = vmatpush.msra.mxu0 0.0
    %838 = vmatpush.msra.mxu0 0.0
    %839 = vmatpush.msra.mxu0 0.0
    %840 = vmatpush.msra.mxu0 0.0
    %841 = vmatpush.msra.mxu0 0.0
    %842 = vmatpush.msra.mxu0 0.0
    %843 = vmatpush.msra.mxu0 0.0
    %844 = vmatpush.msra.mxu0 0.0
    %845 = vmatpush.msra.mxu0 0.0
    %846 = vmatpush.msra.mxu0 %v211
    %847 = vmatpush.msra.mxu0 %v210
    %848 = vmatpush.msra.mxu0 %v209
    %849 = vmatpush.msra.mxu0 %v208
    %850 = vmatmul.f32.gmra.mxu0 %v832
    %v851 = vpop.f32.mrf.mxu0
    %v852 = vadd.f32 %v216, %v851
    %853 = vdwg.mxu0
    %854 = vst [vmem:[%s7 + $0x18] sm:$0xff] %v852
    %855 = vmatpush.msra.mxu0 0.0
    %856 = vmatpush.msra.mxu0 0.0
    %857 = vmatpush.msra.mxu0 0.0
    %858 = vmatpush.msra.mxu0 0.0
    %859 = vmatpush.msra.mxu0 0.0
    %860 = vmatpush.msra.mxu0 0.0
    %861 = vmatpush.msra.mxu0 0.0
    %862 = vmatpush.msra.mxu0 0.0
    %863 = vmatpush.msra.mxu0 0.0
    %864 = vmatpush.msra.mxu0 0.0
    %865 = vmatpush.msra.mxu0 0.0
    %866 = vmatpush.msra.mxu0 0.0
    %867 = vmatpush.msra.mxu0 %v199
    %868 = vmatpush.msra.mxu0 %v198
    %869 = vmatpush.msra.mxu0 %v197
    %870 = vmatpush.msra.mxu0 %v196
    %871 = vmatmul.f32.gmra.mxu0 %v763
    %v872 = vpop.f32.mrf.mxu0
    %v873 = vadd.f32 %v213, %v872
    %874 = vdwg.mxu0
    %v875 = vadd.f32 %v273, %v873
    %v876 = vmul.f32 %v875, 0.5
    %v877 = vtanh.pop %v876
    %v878 = vadd.f32 %v877, 1.0
    %v879 = vmul.f32 %v878, 0.5
    %881 = vrot.lane.b32.xlu0 %v873, 64
    %v882 = vpop.permute.xlu0 %881
    %v884 = vmul.f32 %v879, %v882
    %886 = vrot.lane.b32.xlu0 %v884, 64
    %v887 = vpop.permute.xlu0 %886
    %v889 = vadd.f32 %v273, %v887
    %v890 = vtanh.pop %v889
    %v891 = vsub.f32 1.0, %v879
    %893 = vrot.lane.b32.xlu0 %v890, 96
    %v894 = vpop.permute.xlu0 %893
    %v896 = vmul.f32 %v891, %v894
    %v897 = vmul.f32 %v879, %v759
    %v898 = vadd.f32 %v896, %v897
    %900 = vrot.lane.b32.xlu0 %v898, 96
    %v901 = vpop.permute.xlu0 %900
    %v902 = vsel %vm218, %v901, 0
    %904 = vmatpush.msra.mxu0 0.0
    %905 = vmatpush.msra.mxu0 0.0
    %906 = vmatpush.msra.mxu0 0.0
    %907 = vmatpush.msra.mxu0 0.0
    %908 = vmatpush.msra.mxu0 0.0
    %909 = vmatpush.msra.mxu0 0.0
    %910 = vmatpush.msra.mxu0 0.0
    %911 = vmatpush.msra.mxu0 0.0
    %912 = vmatpush.msra.mxu0 0.0
    %913 = vmatpush.msra.mxu0 0.0
    %914 = vmatpush.msra.mxu0 0.0
    %915 = vmatpush.msra.mxu0 0.0
    %916 = vmatpush.msra.mxu0 %v203
    %917 = vmatpush.msra.mxu0 %v202
    %918 = vmatpush.msra.mxu0 %v201
    %919 = vmatpush.msra.mxu0 %v200
    %920 = vmatmul.f32.gmra.mxu0 %v902
    %v921 = vpop.f32.mrf.mxu0
    %v922 = vadd.f32 %v214, %v921
    %923 = vdwg.mxu0
    %924 = vmatpush.msra.mxu0 0.0
    %925 = vmatpush.msra.mxu0 0.0
    %926 = vmatpush.msra.mxu0 0.0
    %927 = vmatpush.msra.mxu0 0.0
    %928 = vmatpush.msra.mxu0 0.0
    %929 = vmatpush.msra.mxu0 0.0
    %930 = vmatpush.msra.mxu0 0.0
    %931 = vmatpush.msra.mxu0 0.0
    %932 = vmatpush.msra.mxu0 0.0
    %933 = vmatpush.msra.mxu0 0.0
    %934 = vmatpush.msra.mxu0 0.0
    %935 = vmatpush.msra.mxu0 0.0
    %936 = vmatpush.msra.mxu0 %v207
    %937 = vmatpush.msra.mxu0 %v206
    %938 = vmatpush.msra.mxu0 %v205
    %939 = vmatpush.msra.mxu0 %v204
    %940 = vmatmul.f32.gmra.mxu0 %v832
    %v941 = vpop.f32.mrf.mxu0
    %v942 = vadd.f32 %v215, %v941
    %943 = vdwg.mxu0
    %v944 = vadd.f32 %v922, %v942
    %v945 = vmul.f32 %v944, 0.5
    %v946 = vtanh.pop %v945
    %v947 = vadd.f32 %v946, 1.0
    %v948 = vmul.f32 %v947, 0.5
    %950 = vrot.lane.b32.xlu0 %v942, 64
    %v951 = vpop.permute.xlu0 %950
    %v953 = vmul.f32 %v948, %v951
    %955 = vrot.lane.b32.xlu0 %v953, 64
    %v956 = vpop.permute.xlu0 %955
    %v958 = vadd.f32 %v922, %v956
    %v959 = vtanh.pop %v958
    %v960 = vsub.f32 1.0, %v948
    %962 = vrot.lane.b32.xlu0 %v959, 96
    %v963 = vpop.permute.xlu0 %962
    %v965 = vmul.f32 %v960, %v963
    %v966 = vmul.f32 %v948, %v828
    %v967 = vadd.f32 %v965, %v966
    %969 = vrot.lane.b32.xlu0 %v967, 96
    %v970 = vpop.permute.xlu0 %969
    %v971 = vsel %vm218, %v970, 0
    %973 = vmatpush.msra.mxu0 0.0
    %974 = vmatpush.msra.mxu0 0.0
    %975 = vmatpush.msra.mxu0 0.0
    %976 = vmatpush.msra.mxu0 0.0
    %977 = vmatpush.msra.mxu0 0.0
    %978 = vmatpush.msra.mxu0 0.0
    %979 = vmatpush.msra.mxu0 0.0
    %980 = vmatpush.msra.mxu0 0.0
    %981 = vmatpush.msra.mxu0 0.0
    %982 = vmatpush.msra.mxu0 0.0
    %983 = vmatpush.msra.mxu0 0.0
    %984 = vmatpush.msra.mxu0 0.0
    %985 = vmatpush.msra.mxu0 %v211
    %986 = vmatpush.msra.mxu0 %v210
    %987 = vmatpush.msra.mxu0 %v209
    %988 = vmatpush.msra.mxu0 %v208
    %989 = vmatmul.f32.gmra.mxu0 %v971
    %v990 = vpop.f32.mrf.mxu0
    %v991 = vadd.f32 %v216, %v990
    %992 = vdwg.mxu0
    %993 = vst [vmem:[%s7 + $0x20] sm:$0xff] %v991
    %994 = vmatpush.msra.mxu0 0.0
    %995 = vmatpush.msra.mxu0 0.0
    %996 = vmatpush.msra.mxu0 0.0
    %997 = vmatpush.msra.mxu0 0.0
    %998 = vmatpush.msra.mxu0 0.0
    %999 = vmatpush.msra.mxu0 0.0
    %1000 = vmatpush.msra.mxu0 0.0
    %1001 = vmatpush.msra.mxu0 0.0
    %1002 = vmatpush.msra.mxu0 0.0
    %1003 = vmatpush.msra.mxu0 0.0
    %1004 = vmatpush.msra.mxu0 0.0
    %1005 = vmatpush.msra.mxu0 0.0
    %1006 = vmatpush.msra.mxu0 %v199
    %1007 = vmatpush.msra.mxu0 %v198
    %1008 = vmatpush.msra.mxu0 %v197
    %1009 = vmatpush.msra.mxu0 %v196
    %1010 = vmatmul.f32.gmra.mxu0 %v902
    %v1011 = vpop.f32.mrf.mxu0
    %v1012 = vadd.f32 %v213, %v1011
    %1013 = vdwg.mxu0
    %v1014 = vadd.f32 %v276, %v1012
    %v1015 = vmul.f32 %v1014, 0.5
    %v1016 = vtanh.pop %v1015
    %v1017 = vadd.f32 %v1016, 1.0
    %v1018 = vmul.f32 %v1017, 0.5
    %1020 = vrot.lane.b32.xlu0 %v1012, 64
    %v1021 = vpop.permute.xlu0 %1020
    %v1023 = vmul.f32 %v1018, %v1021
    %1025 = vrot.lane.b32.xlu0 %v1023, 64
    %v1026 = vpop.permute.xlu0 %1025
    %v1028 = vadd.f32 %v276, %v1026
    %v1029 = vtanh.pop %v1028
    %v1030 = vsub.f32 1.0, %v1018
    %1032 = vrot.lane.b32.xlu0 %v1029, 96
    %v1033 = vpop.permute.xlu0 %1032
    %v1035 = vmul.f32 %v1030, %v1033
    %v1036 = vmul.f32 %v1018, %v898
    %v1037 = vadd.f32 %v1035, %v1036
    %1039 = vrot.lane.b32.xlu0 %v1037, 96
    %v1040 = vpop.permute.xlu0 %1039
    %v1041 = vsel %vm218, %v1040, 0
    %1043 = vmatpush.msra.mxu0 0.0
    %1044 = vmatpush.msra.mxu0 0.0
    %1045 = vmatpush.msra.mxu0 0.0
    %1046 = vmatpush.msra.mxu0 0.0
    %1047 = vmatpush.msra.mxu0 0.0
    %1048 = vmatpush.msra.mxu0 0.0
    %1049 = vmatpush.msra.mxu0 0.0
    %1050 = vmatpush.msra.mxu0 0.0
    %1051 = vmatpush.msra.mxu0 0.0
    %1052 = vmatpush.msra.mxu0 0.0
    %1053 = vmatpush.msra.mxu0 0.0
    %1054 = vmatpush.msra.mxu0 0.0
    %1055 = vmatpush.msra.mxu0 %v203
    %1056 = vmatpush.msra.mxu0 %v202
    %1057 = vmatpush.msra.mxu0 %v201
    %1058 = vmatpush.msra.mxu0 %v200
    %1059 = vmatmul.f32.gmra.mxu0 %v1041
    %v1060 = vpop.f32.mrf.mxu0
    %v1061 = vadd.f32 %v214, %v1060
    %1062 = vdwg.mxu0
    %1063 = vmatpush.msra.mxu0 0.0
    %1064 = vmatpush.msra.mxu0 0.0
    %1065 = vmatpush.msra.mxu0 0.0
    %1066 = vmatpush.msra.mxu0 0.0
    %1067 = vmatpush.msra.mxu0 0.0
    %1068 = vmatpush.msra.mxu0 0.0
    %1069 = vmatpush.msra.mxu0 0.0
    %1070 = vmatpush.msra.mxu0 0.0
    %1071 = vmatpush.msra.mxu0 0.0
    %1072 = vmatpush.msra.mxu0 0.0
    %1073 = vmatpush.msra.mxu0 0.0
    %1074 = vmatpush.msra.mxu0 0.0
    %1075 = vmatpush.msra.mxu0 %v207
    %1076 = vmatpush.msra.mxu0 %v206
    %1077 = vmatpush.msra.mxu0 %v205
    %1078 = vmatpush.msra.mxu0 %v204
    %1079 = vmatmul.f32.gmra.mxu0 %v971
    %v1080 = vpop.f32.mrf.mxu0
    %v1081 = vadd.f32 %v215, %v1080
    %1082 = vdwg.mxu0
    %v1083 = vadd.f32 %v1061, %v1081
    %v1084 = vmul.f32 %v1083, 0.5
    %v1085 = vtanh.pop %v1084
    %v1086 = vadd.f32 %v1085, 1.0
    %v1087 = vmul.f32 %v1086, 0.5
    %1089 = vrot.lane.b32.xlu0 %v1081, 64
    %v1090 = vpop.permute.xlu0 %1089
    %v1092 = vmul.f32 %v1087, %v1090
    %1094 = vrot.lane.b32.xlu0 %v1092, 64
    %v1095 = vpop.permute.xlu0 %1094
    %v1097 = vadd.f32 %v1061, %v1095
    %v1098 = vtanh.pop %v1097
    %v1099 = vsub.f32 1.0, %v1087
    %1101 = vrot.lane.b32.xlu0 %v1098, 96
    %v1102 = vpop.permute.xlu0 %1101
    %v1104 = vmul.f32 %v1099, %v1102
    %v1105 = vmul.f32 %v1087, %v967
    %v1106 = vadd.f32 %v1104, %v1105
    %1108 = vrot.lane.b32.xlu0 %v1106, 96
    %v1109 = vpop.permute.xlu0 %1108
    %v1110 = vsel %vm218, %v1109, 0
    %1112 = vmatpush.msra.mxu0 0.0
    %1113 = vmatpush.msra.mxu0 0.0
    %1114 = vmatpush.msra.mxu0 0.0
    %1115 = vmatpush.msra.mxu0 0.0
    %1116 = vmatpush.msra.mxu0 0.0
    %1117 = vmatpush.msra.mxu0 0.0
    %1118 = vmatpush.msra.mxu0 0.0
    %1119 = vmatpush.msra.mxu0 0.0
    %1120 = vmatpush.msra.mxu0 0.0
    %1121 = vmatpush.msra.mxu0 0.0
    %1122 = vmatpush.msra.mxu0 0.0
    %1123 = vmatpush.msra.mxu0 0.0
    %1124 = vmatpush.msra.mxu0 %v211
    %1125 = vmatpush.msra.mxu0 %v210
    %1126 = vmatpush.msra.mxu0 %v209
    %1127 = vmatpush.msra.mxu0 %v208
    %1128 = vmatmul.f32.gmra.mxu0 %v1110
    %v1129 = vpop.f32.mrf.mxu0
    %v1130 = vadd.f32 %v216, %v1129
    %1131 = vdwg.mxu0
    %1132 = vst [vmem:[%s7 + $0x28] sm:$0xff] %v1130
    %1133 = vmatpush.msra.mxu0 0.0
    %1134 = vmatpush.msra.mxu0 0.0
    %1135 = vmatpush.msra.mxu0 0.0
    %1136 = vmatpush.msra.mxu0 0.0
    %1137 = vmatpush.msra.mxu0 0.0
    %1138 = vmatpush.msra.mxu0 0.0
    %1139 = vmatpush.msra.mxu0 0.0
    %1140 = vmatpush.msra.mxu0 0.0
    %1141 = vmatpush.msra.mxu0 0.0
    %1142 = vmatpush.msra.mxu0 0.0
    %1143 = vmatpush.msra.mxu0 0.0
    %1144 = vmatpush.msra.mxu0 0.0
    %1145 = vmatpush.msra.mxu0 %v199
    %1146 = vmatpush.msra.mxu0 %v198
    %1147 = vmatpush.msra.mxu0 %v197
    %1148 = vmatpush.msra.mxu0 %v196
    %1149 = vmatmul.f32.gmra.mxu0 %v1041
    %v1150 = vpop.f32.mrf.mxu0
    %v1151 = vadd.f32 %v213, %v1150
    %1152 = vdwg.mxu0
    %v1153 = vadd.f32 %v279, %v1151
    %v1154 = vmul.f32 %v1153, 0.5
    %v1155 = vtanh.pop %v1154
    %v1156 = vadd.f32 %v1155, 1.0
    %v1157 = vmul.f32 %v1156, 0.5
    %1159 = vrot.lane.b32.xlu0 %v1151, 64
    %v1160 = vpop.permute.xlu0 %1159
    %v1162 = vmul.f32 %v1157, %v1160
    %1164 = vrot.lane.b32.xlu0 %v1162, 64
    %v1165 = vpop.permute.xlu0 %1164
    %v1167 = vadd.f32 %v279, %v1165
    %v1168 = vtanh.pop %v1167
    %v1169 = vsub.f32 1.0, %v1157
    %1171 = vrot.lane.b32.xlu0 %v1168, 96
    %v1172 = vpop.permute.xlu0 %1171
    %v1174 = vmul.f32 %v1169, %v1172
    %v1175 = vmul.f32 %v1157, %v1037
    %v1176 = vadd.f32 %v1174, %v1175
    %1178 = vrot.lane.b32.xlu0 %v1176, 96
    %v1179 = vpop.permute.xlu0 %1178
    %v1180 = vsel %vm218, %v1179, 0
    %1182 = vmatpush.msra.mxu0 0.0
    %1183 = vmatpush.msra.mxu0 0.0
    %1184 = vmatpush.msra.mxu0 0.0
    %1185 = vmatpush.msra.mxu0 0.0
    %1186 = vmatpush.msra.mxu0 0.0
    %1187 = vmatpush.msra.mxu0 0.0
    %1188 = vmatpush.msra.mxu0 0.0
    %1189 = vmatpush.msra.mxu0 0.0
    %1190 = vmatpush.msra.mxu0 0.0
    %1191 = vmatpush.msra.mxu0 0.0
    %1192 = vmatpush.msra.mxu0 0.0
    %1193 = vmatpush.msra.mxu0 0.0
    %1194 = vmatpush.msra.mxu0 %v203
    %1195 = vmatpush.msra.mxu0 %v202
    %1196 = vmatpush.msra.mxu0 %v201
    %1197 = vmatpush.msra.mxu0 %v200
    %1198 = vmatmul.f32.gmra.mxu0 %v1180
    %v1199 = vpop.f32.mrf.mxu0
    %v1200 = vadd.f32 %v214, %v1199
    %1201 = vdwg.mxu0
    %1202 = vmatpush.msra.mxu0 0.0
    %1203 = vmatpush.msra.mxu0 0.0
    %1204 = vmatpush.msra.mxu0 0.0
    %1205 = vmatpush.msra.mxu0 0.0
    %1206 = vmatpush.msra.mxu0 0.0
    %1207 = vmatpush.msra.mxu0 0.0
    %1208 = vmatpush.msra.mxu0 0.0
    %1209 = vmatpush.msra.mxu0 0.0
    %1210 = vmatpush.msra.mxu0 0.0
    %1211 = vmatpush.msra.mxu0 0.0
    %1212 = vmatpush.msra.mxu0 0.0
    %1213 = vmatpush.msra.mxu0 0.0
    %1214 = vmatpush.msra.mxu0 %v207
    %1215 = vmatpush.msra.mxu0 %v206
    %1216 = vmatpush.msra.mxu0 %v205
    %1217 = vmatpush.msra.mxu0 %v204
    %1218 = vmatmul.f32.gmra.mxu0 %v1110
    %v1219 = vpop.f32.mrf.mxu0
    %v1220 = vadd.f32 %v215, %v1219
    %1221 = vdwg.mxu0
    %v1222 = vadd.f32 %v1200, %v1220
    %v1223 = vmul.f32 %v1222, 0.5
    %v1224 = vtanh.pop %v1223
    %v1225 = vadd.f32 %v1224, 1.0
    %v1226 = vmul.f32 %v1225, 0.5
    %1228 = vrot.lane.b32.xlu0 %v1220, 64
    %v1229 = vpop.permute.xlu0 %1228
    %v1231 = vmul.f32 %v1226, %v1229
    %1233 = vrot.lane.b32.xlu0 %v1231, 64
    %v1234 = vpop.permute.xlu0 %1233
    %v1236 = vadd.f32 %v1200, %v1234
    %v1237 = vtanh.pop %v1236
    %v1238 = vsub.f32 1.0, %v1226
    %1240 = vrot.lane.b32.xlu0 %v1237, 96
    %v1241 = vpop.permute.xlu0 %1240
    %v1243 = vmul.f32 %v1238, %v1241
    %v1244 = vmul.f32 %v1226, %v1106
    %v1245 = vadd.f32 %v1243, %v1244
    %1247 = vrot.lane.b32.xlu0 %v1245, 96
    %v1248 = vpop.permute.xlu0 %1247
    %v1249 = vsel %vm218, %v1248, 0
    %1251 = vmatpush.msra.mxu0 0.0
    %1252 = vmatpush.msra.mxu0 0.0
    %1253 = vmatpush.msra.mxu0 0.0
    %1254 = vmatpush.msra.mxu0 0.0
    %1255 = vmatpush.msra.mxu0 0.0
    %1256 = vmatpush.msra.mxu0 0.0
    %1257 = vmatpush.msra.mxu0 0.0
    %1258 = vmatpush.msra.mxu0 0.0
    %1259 = vmatpush.msra.mxu0 0.0
    %1260 = vmatpush.msra.mxu0 0.0
    %1261 = vmatpush.msra.mxu0 0.0
    %1262 = vmatpush.msra.mxu0 0.0
    %1263 = vmatpush.msra.mxu0 %v211
    %1264 = vmatpush.msra.mxu0 %v210
    %1265 = vmatpush.msra.mxu0 %v209
    %1266 = vmatpush.msra.mxu0 %v208
    %1267 = vmatmul.f32.gmra.mxu0 %v1249
    %v1268 = vpop.f32.mrf.mxu0
    %v1269 = vadd.f32 %v216, %v1268
    %1270 = vdwg.mxu0
    %1271 = vst [vmem:[%s7 + $0x30] sm:$0xff] %v1269
    %1272 = vmatpush.msra.mxu0 0.0
    %1273 = vmatpush.msra.mxu0 0.0
    %1274 = vmatpush.msra.mxu0 0.0
    %1275 = vmatpush.msra.mxu0 0.0
    %1276 = vmatpush.msra.mxu0 0.0
    %1277 = vmatpush.msra.mxu0 0.0
    %1278 = vmatpush.msra.mxu0 0.0
    %1279 = vmatpush.msra.mxu0 0.0
    %1280 = vmatpush.msra.mxu0 0.0
    %1281 = vmatpush.msra.mxu0 0.0
    %1282 = vmatpush.msra.mxu0 0.0
    %1283 = vmatpush.msra.mxu0 0.0
    %1284 = vmatpush.msra.mxu0 %v199
    %1285 = vmatpush.msra.mxu0 %v198
    %1286 = vmatpush.msra.mxu0 %v197
    %1287 = vmatpush.msra.mxu0 %v196
    %1288 = vmatmul.f32.gmra.mxu0 %v1180
    %v1289 = vpop.f32.mrf.mxu0
    %v1290 = vadd.f32 %v213, %v1289
    %1291 = vdwg.mxu0
    %v1292 = vadd.f32 %v282, %v1290
    %v1293 = vmul.f32 %v1292, 0.5
    %v1294 = vtanh.pop %v1293
    %v1295 = vadd.f32 %v1294, 1.0
    %v1296 = vmul.f32 %v1295, 0.5
    %1298 = vrot.lane.b32.xlu0 %v1290, 64
    %v1299 = vpop.permute.xlu0 %1298
    %v1301 = vmul.f32 %v1296, %v1299
    %1303 = vrot.lane.b32.xlu0 %v1301, 64
    %v1304 = vpop.permute.xlu0 %1303
    %v1306 = vadd.f32 %v282, %v1304
    %v1307 = vtanh.pop %v1306
    %v1308 = vsub.f32 1.0, %v1296
    %1310 = vrot.lane.b32.xlu0 %v1307, 96
    %v1311 = vpop.permute.xlu0 %1310
    %v1313 = vmul.f32 %v1308, %v1311
    %v1314 = vmul.f32 %v1296, %v1176
    %v1315 = vadd.f32 %v1313, %v1314
    %1317 = vrot.lane.b32.xlu0 %v1315, 96
    %v1318 = vpop.permute.xlu0 %1317
    %v1319 = vsel %vm218, %v1318, 0
    %1321 = vmatpush.msra.mxu0 0.0
    %1322 = vmatpush.msra.mxu0 0.0
    %1323 = vmatpush.msra.mxu0 0.0
    %1324 = vmatpush.msra.mxu0 0.0
    %1325 = vmatpush.msra.mxu0 0.0
    %1326 = vmatpush.msra.mxu0 0.0
    %1327 = vmatpush.msra.mxu0 0.0
    %1328 = vmatpush.msra.mxu0 0.0
    %1329 = vmatpush.msra.mxu0 0.0
    %1330 = vmatpush.msra.mxu0 0.0
    %1331 = vmatpush.msra.mxu0 0.0
    %1332 = vmatpush.msra.mxu0 0.0
    %1333 = vmatpush.msra.mxu0 %v203
    %1334 = vmatpush.msra.mxu0 %v202
    %1335 = vmatpush.msra.mxu0 %v201
    %1336 = vmatpush.msra.mxu0 %v200
    %1337 = vmatmul.f32.gmra.mxu0 %v1319
    %v1338 = vpop.f32.mrf.mxu0
    %v1339 = vadd.f32 %v214, %v1338
    %1340 = vdwg.mxu0
    %1341 = vmatpush.msra.mxu0 0.0
    %1342 = vmatpush.msra.mxu0 0.0
    %1343 = vmatpush.msra.mxu0 0.0
    %1344 = vmatpush.msra.mxu0 0.0
    %1345 = vmatpush.msra.mxu0 0.0
    %1346 = vmatpush.msra.mxu0 0.0
    %1347 = vmatpush.msra.mxu0 0.0
    %1348 = vmatpush.msra.mxu0 0.0
    %1349 = vmatpush.msra.mxu0 0.0
    %1350 = vmatpush.msra.mxu0 0.0
    %1351 = vmatpush.msra.mxu0 0.0
    %1352 = vmatpush.msra.mxu0 0.0
    %1353 = vmatpush.msra.mxu0 %v207
    %1354 = vmatpush.msra.mxu0 %v206
    %1355 = vmatpush.msra.mxu0 %v205
    %1356 = vmatpush.msra.mxu0 %v204
    %1357 = vmatmul.f32.gmra.mxu0 %v1249
    %v1358 = vpop.f32.mrf.mxu0
    %v1359 = vadd.f32 %v215, %v1358
    %1360 = vdwg.mxu0
    %v1361 = vadd.f32 %v1339, %v1359
    %v1362 = vmul.f32 %v1361, 0.5
    %v1363 = vtanh.pop %v1362
    %v1364 = vadd.f32 %v1363, 1.0
    %v1365 = vmul.f32 %v1364, 0.5
    %1367 = vrot.lane.b32.xlu0 %v1359, 64
    %v1368 = vpop.permute.xlu0 %1367
    %v1370 = vmul.f32 %v1365, %v1368
    %1372 = vrot.lane.b32.xlu0 %v1370, 64
    %v1373 = vpop.permute.xlu0 %1372
    %v1375 = vadd.f32 %v1339, %v1373
    %v1376 = vtanh.pop %v1375
    %v1377 = vsub.f32 1.0, %v1365
    %1379 = vrot.lane.b32.xlu0 %v1376, 96
    %v1380 = vpop.permute.xlu0 %1379
    %v1382 = vmul.f32 %v1377, %v1380
    %v1383 = vmul.f32 %v1365, %v1245
    %v1384 = vadd.f32 %v1382, %v1383
    %1386 = vrot.lane.b32.xlu0 %v1384, 96
    %v1387 = vpop.permute.xlu0 %1386
    %v1388 = vsel %vm218, %v1387, 0
    %1390 = vmatpush.msra.mxu0 0.0
    %1391 = vmatpush.msra.mxu0 0.0
    %1392 = vmatpush.msra.mxu0 0.0
    %1393 = vmatpush.msra.mxu0 0.0
    %1394 = vmatpush.msra.mxu0 0.0
    %1395 = vmatpush.msra.mxu0 0.0
    %1396 = vmatpush.msra.mxu0 0.0
    %1397 = vmatpush.msra.mxu0 0.0
    %1398 = vmatpush.msra.mxu0 0.0
    %1399 = vmatpush.msra.mxu0 0.0
    %1400 = vmatpush.msra.mxu0 0.0
    %1401 = vmatpush.msra.mxu0 0.0
    %1402 = vmatpush.msra.mxu0 %v211
    %1403 = vmatpush.msra.mxu0 %v210
    %1404 = vmatpush.msra.mxu0 %v209
    %1405 = vmatpush.msra.mxu0 %v208
    %1406 = vmatmul.f32.gmra.mxu0 %v1388
    %v1407 = vpop.f32.mrf.mxu0
    %v1408 = vadd.f32 %v216, %v1407
    %1409 = vdwg.mxu0
    %1410 = vst [vmem:[%s7 + $0x38] sm:$0xff] %v1408
    %1412 = vst.msk [vmem:[%s8] sm:$0xff] %vm218, %v1318
    %s1414 = scalar_lea.vmem %s8, 8
    %1415 = vst.msk [vmem:[%s1414] sm:$0xff] %vm218, %v1387
    // Predicated region
    $region38: #{lstmlm_forward.1} parent=1 // pred_check
      _
    $region39: #{lstmlm_forward.1} parent=1 // pred_check_branch
      %1417 = sbr.rel (0) target = $region41
    $region40: #{lstmlm_forward.1} parent=1 // pred_region
      _
    $region41: #{lstmlm_forward.1} parent=1 // pred_fallthru
      _
    // Predicated region
    $region42: #{lstmlm_forward.1} parent=1 // pred_check
      _
    $region43: #{lstmlm_forward.1} parent=1 // pred_check_branch
      %1419 = sbr.rel (0) target = $region45
    $region44: #{lstmlm_forward.1} parent=1 // pred_region
      _
    $region45: #{lstmlm_forward.1} parent=1 // pred_fallthru
      _
    // Predicated region
    $region46: #{lstmlm_forward.1} parent=1 // pred_check
      _
    $region47: #{lstmlm_forward.1} parent=1 // pred_check_branch
      %1421 = sbr.rel (0) target = $region49
    $region48: #{lstmlm_forward.1} parent=1 // pred_region
      _
    $region49: #{lstmlm_forward.1} parent=1 // pred_fallthru
      _
    // Predicated region
    $region50: #{lstmlm_forward.1} parent=1 // pred_check
      _
    $region51: #{lstmlm_forward.1} parent=1 // pred_check_branch
      %1423 = sbr.rel (0) target = $region53
    $region52: #{lstmlm_forward.1} parent=1 // pred_region
      _
    $region53: #{lstmlm_forward.1} parent=1 // pred_fallthru
      _
    %1424 = vsyncpa [#allocation3], 1
    %1425 = vsyncpa [#allocation5], 1

</llo_original>
